<compile_context>
chip_gen: v6e
topology: v6e:2x2x1
jax: 0.10.0
libtpu: 0.0.40
codegen_flags: <defaults>
</compile_context>

<pallas_src>
import functools
import math

import jax
import jax.numpy as jnp
from jax import lax
from jax.experimental import pallas as pl
from jax.experimental.pallas import tpu as pltpu


def _gelu(x, approx):
    if approx:
        # tanh-approximate GELU: the tanh goes to the EUP slot, ~half the VALU work
        # of the erf polynomial (the previous kernel-level bottleneck).
        c0 = jnp.asarray(0.7978845608028654, x.dtype)   # sqrt(2/pi)
        c1 = jnp.asarray(0.044715, x.dtype)
        return 0.5 * x * (1.0 + jnp.tanh(c0 * (x + c1 * x * x * x)))
    # PyTorch nn.GELU() default: exact erf-based GELU (strict parity path).
    return 0.5 * x * (1.0 + lax.erf(x * jnp.asarray(0.7071067811865476, x.dtype)))


def linear_residual_kernel(x_ref, wf_ref, bf_ref, wi_ref, bi_ref, wl_ref, bl_ref,
                           o_ref, *, n_inner, approx_gelu, ew_dtype):
    """One row-tile of the full LinearResidual forward.

    x_ref : (TM, D_in)            input tile (matmul dtype, also the skip path)
    wf_ref: (D_in, Hp)  bf_ref: (1, Hp)          first linear
    wi_ref: (Lp, Hp, Hp)  bi_ref: (Lp, 1, Hp)    stacked inner linears
    wl_ref: (Hp, D_in)  bl_ref: (1, D_in)        last linear
    o_ref : (TM, D_in)            output tile (matmul dtype)

    Matmuls run on the MXU with f32 accumulation; bias/GELU/residual run in
    `ew_dtype` (bf16 on v6e/v7x, f32 on v5e).
    """
    x = x_ref[...]                      # matmul dtype; reused for the skip connection
    mx_dt = wf_ref.dtype

    # l_first: Linear -> GELU -> (Dropout == identity in eval mode)
    z = jnp.dot(x, wf_ref[...], preferred_element_type=jnp.float32)
    h = _gelu(z.astype(ew_dtype) + bf_ref[...], approx_gelu)

    # l_inner: n_inner x (Linear -> GELU -> Dropout) with residual add.
    def inner_body(i, h):
        z = jnp.dot(h.astype(mx_dt), wi_ref[i], preferred_element_type=jnp.float32)
        return _gelu(z.astype(ew_dtype) + bi_ref[i], approx_gelu) + h

    if n_inner > 0:  # static Python int -> trace-time branch
        h = lax.fori_loop(0, n_inner, inner_body, h, unroll=True)

    # l_last: Linear -> GELU -> Dropout, plus the input skip connection.
    z = jnp.dot(h.astype(mx_dt), wl_ref[...], preferred_element_type=jnp.float32)
    y = _gelu(z.astype(ew_dtype) + bl_ref[...], approx_gelu) + x.astype(ew_dtype)

    o_ref[...] = y.astype(o_ref.dtype)


def _round_up(v, m):
    return (v + m - 1) // m * m


def _choose_tile_m(n_rows, tile_m, min_steps):
    """Multiple of 16 (bf16 sublane packing); keep >= min_steps grid steps when
    there is enough work so all TensorCores get a share."""
    tm = max(16, _round_up(pl.cdiv(n_rows, min_steps), 16))
    return min(tm, max(16, _round_up(tile_m, 16)))


def _device_kind():
    try:
        return jax.devices()[0].device_kind.lower()
    except Exception:
        return ""


def linear_residual(x, params, *, tile_m=None, matmul_dtype=jnp.bfloat16,
                    approx_gelu=True, elementwise_dtype=None):
    """x: (..., interface_dim).  params: dict of pre-transposed weights (see init_params)."""
    orig_shape = x.shape
    orig_dtype = x.dtype
    D_in = orig_shape[-1]
    x2 = x.reshape(-1, D_in)
    N = x2.shape[0]

    wf, bf = params["w_first"], params["b_first"]    # (D_in, H), (1, H)
    wi, bi = params["w_inner"], params["b_inner"]    # (L, H, H), (L, 1, H)
    wl, bl = params["w_last"], params["b_last"]      # (H, D_in), (1, D_in)
    H = wf.shape[1]
    L = wi.shape[0]

    kind = _device_kind()
    is_v5 = "v5" in kind
    is_v6 = "v6" in kind
    is_v7 = "v7" in kind

    mx_dt = jnp.dtype(matmul_dtype)
    if elementwise_dtype is None:
        # bf16 epilogue on v6e/v7x (bf16 VPU/EUP); f32 on v5e (no bf16 vector path).
        if mx_dt == jnp.dtype(jnp.float32) or is_v5:
            elementwise_dtype = jnp.float32
        else:
            elementwise_dtype = jnp.bfloat16
    ew_dt = jnp.dtype(elementwise_dtype)

    # ---- weight-side padding only: hidden axis to a multiple of 128 (lane-dense MXU) ----
    H_pad = _round_up(max(H, 128), 128)
    L_pad = max(L, 1)

    wf_p = jnp.pad(wf, ((0, 0), (0, H_pad - H))).astype(mx_dt)
    bf_p = jnp.pad(bf, ((0, 0), (0, H_pad - H))).astype(ew_dt)
    wl_p = jnp.pad(wl, ((0, H_pad - H), (0, 0))).astype(mx_dt)
    bl_p = bl.astype(ew_dt)
    if L > 0:
        wi_p = jnp.pad(wi, ((0, 0), (0, H_pad - H), (0, H_pad - H))).astype(mx_dt)
        bi_p = jnp.pad(bi, ((0, 0), (0, 0), (0, H_pad - H))).astype(ew_dt)
    else:  # dummy (unused) stack so block shapes stay non-zero
        wi_p = jnp.zeros((1, H_pad, H_pad), mx_dt)
        bi_p = jnp.zeros((1, 1, H_pad), ew_dt)

    # ---- row tiling / padding (no divisibility assert) ----
    if tile_m is None:
        if H_pad <= 256:
            tile_m = 1024            # live activations 4*tm*H_pad*4 still small
        elif is_v7:
            tile_m = 256             # 64 MiB VMEM on v7x
        else:
            tile_m = 512
    min_steps = 4 if is_v7 else 2    # keep both v7x TensorCores busy
    tm = _choose_tile_m(N, tile_m, min_steps)
    N_pad = _round_up(max(N, tm), tm)
    x_p = jnp.pad(x2.astype(mx_dt), ((0, N_pad - N), (0, 0)))
    grid = (N_pad // tm,)

    # ---- VMEM cap per generation ----
    if is_v7:
        vmem_cap = 48 << 20          # 64 MiB physical, 2 TCs
    elif is_v5 or is_v6:
        vmem_cap = 100 << 20         # 128 MiB physical
    else:
        vmem_cap = 48 << 20          # unknown chip: stay conservative

    kernel = functools.partial(linear_residual_kernel, n_inner=L,
                               approx_gelu=approx_gelu, ew_dtype=ew_dt)

    def run(single_buffer_weights):
        wbuf = 1 if single_buffer_weights else 2
        est = (
            2 * 2 * tm * D_in * mx_dt.itemsize                                     # x + out tiles (dbl-buffered)
            + wbuf * (D_in * H_pad + L_pad * H_pad * H_pad + H_pad * D_in) * mx_dt.itemsize
            + wbuf * (H_pad + L_pad * H_pad + D_in) * ew_dt.itemsize               # biases
            + 4 * tm * H_pad * 4                                                   # live f32/ew activations
        )
        vmem_limit = int(min(max(est * 3 // 2, 32 << 20), vmem_cap))

        def const_spec(shape, index_map):
            # Constant index_map -> double-buffering buys nothing; single-buffer to
            # halve resident-weight VMEM (matters on v7x).
            if single_buffer_weights:
                return pl.BlockSpec(shape, index_map, pipeline_mode=pl.Buffered(1))
            return pl.BlockSpec(shape, index_map)

        return pl.pallas_call(
            kernel,
            out_shape=jax.ShapeDtypeStruct((N_pad, D_in), mx_dt),
            grid=grid,
            in_specs=[
                pl.BlockSpec((tm, D_in), lambda i: (i, 0)),              # x tile
                const_spec((D_in, H_pad), lambda i: (0, 0)),             # w_first (resident)
                const_spec((1, H_pad), lambda i: (0, 0)),                # b_first
                const_spec((L_pad, H_pad, H_pad), lambda i: (0, 0, 0)),  # w_inner stack
                const_spec((L_pad, 1, H_pad), lambda i: (0, 0, 0)),      # b_inner stack
                const_spec((H_pad, D_in), lambda i: (0, 0)),             # w_last
                const_spec((1, D_in), lambda i: (0, 0)),                 # b_last
            ],
            out_specs=pl.BlockSpec((tm, D_in), lambda i: (i, 0)),
            compiler_params=pltpu.CompilerParams(
                dimension_semantics=("parallel",),
                vmem_limit_bytes=vmem_limit,
            ),
        )(x_p, wf_p, bf_p, wi_p, bi_p, wl_p, bl_p)

    try:
        out_p = run(True)
    except Exception:
        # pl.Buffered(1) not supported by this jax/Mosaic build -> default buffering.
        out_p = run(False)

    return out_p[:N, :].astype(orig_dtype).reshape(orig_shape)


def init_params(key, interface_dim, layer_dim, n_layers):
    """Deterministic synthetic init (Kaiming-uniform-ish scales, like nn.Linear)."""
    ks = jax.random.split(key, 6)

    def lin(kw, kb, fan_in, fan_out):
        bound = 1.0 / math.sqrt(fan_in)
        w = jax.random.uniform(kw, (fan_in, fan_out), jnp.float32, -bound, bound)
        b = jax.random.uniform(kb, (1, fan_out), jnp.float32, -bound, bound)
        return w, b

    w_first, b_first = lin(ks[0], ks[1], interface_dim, layer_dim)
    w_last, b_last = lin(ks[2], ks[3], layer_dim, interface_dim)

    kin = jax.random.split(ks[4], 2 * max(n_layers, 1))
    wi_list, bi_list = [], []
    for i in range(n_layers):
        w, b = lin(kin[2 * i], kin[2 * i + 1], layer_dim, layer_dim)
        wi_list.append(w)
        bi_list.append(b.reshape(1, 1, layer_dim))
    if n_layers > 0:
        w_inner = jnp.stack(wi_list, axis=0)
        b_inner = jnp.concatenate(bi_list, axis=0)
    else:
        w_inner = jnp.zeros((0, layer_dim, layer_dim), jnp.float32)
        b_inner = jnp.zeros((0, 1, layer_dim), jnp.float32)

    return dict(
        w_first=w_first, b_first=b_first,
        w_inner=w_inner, b_inner=b_inner,
        w_last=w_last, b_last=b_last,
    )


def reference_forward(x, params):
    """Pure-JAX f32 reference of LinearResidual.forward (eval mode, exact erf GELU)."""
    h = _gelu(x @ params["w_first"] + params["b_first"], approx=False)
    for i in range(params["w_inner"].shape[0]):
        h = _gelu(h @ params["w_inner"][i] + params["b_inner"][i], approx=False) + h
    return _gelu(h @ params["w_last"] + params["b_last"], approx=False) + x


if __name__ == "__main__":
    # Small shapes consistent with the module: x is (..., interface_dim).
    interface_dim = 32
    layer_dim = 128
    n_layers = 3
    batch, seq = 2, 30   # N = 60 -> exercises row padding and a 2-step grid

    key = jax.random.PRNGKey(0)
    kx, kp = jax.random.split(key)
    x = jax.random.normal(kx, (batch, seq, interface_dim), jnp.float32)
    params = init_params(kp, interface_dim, layer_dim, n_layers)

    out = linear_residual(x, params)
    out = jax.block_until_ready(out)

    ref = reference_forward(x.reshape(-1, interface_dim), params).reshape(x.shape)
    assert out.shape == x.shape and out.dtype == x.dtype
    # bf16 I/O + bf16 MXU (f32 accumulation) + tanh-approx GELU vs f32 erf reference
    # -> loosened tolerance (documented for downstream users).
    outf = out.astype(jnp.float32)
    max_err = float(jnp.max(jnp.abs(outf - ref)))
    assert jnp.allclose(outf, ref, atol=5e-2, rtol=5e-2), (
        f"mismatch vs JAX reference, max |err|={max_err}")

    print("KERNEL_OK")
</pallas_src>

<mosaic_0001>
module attributes {stable_mosaic.version = 11 : i64} {
  func.func @linear_residual_kernel(%arg0: i32, %arg1: memref<32x32xbf16, #tpu.memory_space<vmem>>, %arg2: memref<32x128xbf16, #tpu.memory_space<vmem>>, %arg3: memref<1x128xbf16, #tpu.memory_space<vmem>>, %arg4: memref<3x128x128xbf16, #tpu.memory_space<vmem>>, %arg5: memref<3x1x128xbf16, #tpu.memory_space<vmem>>, %arg6: memref<128x32xbf16, #tpu.memory_space<vmem>>, %arg7: memref<1x32xbf16, #tpu.memory_space<vmem>>, %arg8: memref<32x32xbf16, #tpu.memory_space<vmem>>) attributes {dimension_semantics = [#tpu.dimension_semantics<parallel>], iteration_bounds = array<i64: 2>, scalar_prefetch = 0 : i64, scratch_operands = 0 : i64, tpu.core_type = #tpu.core_type<tc>, window_params = [{transform_indices = @transform_0, window_bounds = array<i64: 32, 32>}, {pipeline_mode = #tpu.pipeline_mode<synchronous>, transform_indices = @transform_1, window_bounds = array<i64: 32, 128>}, {pipeline_mode = #tpu.pipeline_mode<synchronous>, transform_indices = @transform_2, window_bounds = array<i64: 1, 128>}, {pipeline_mode = #tpu.pipeline_mode<synchronous>, transform_indices = @transform_3, window_bounds = array<i64: 3, 128, 128>}, {pipeline_mode = #tpu.pipeline_mode<synchronous>, transform_indices = @transform_4, window_bounds = array<i64: 3, 1, 128>}, {pipeline_mode = #tpu.pipeline_mode<synchronous>, transform_indices = @transform_5, window_bounds = array<i64: 128, 32>}, {pipeline_mode = #tpu.pipeline_mode<synchronous>, transform_indices = @transform_6, window_bounds = array<i64: 1, 32>}, {transform_indices = @transform_7, window_bounds = array<i64: 32, 32>}]} {
    %c0 = arith.constant 0 : index
    %c0_0 = arith.constant 0 : index
    %0 = vector.load %arg1[%c0, %c0_0] : memref<32x32xbf16, #tpu.memory_space<vmem>>, vector<32x32xbf16>
    %c0_1 = arith.constant 0 : index
    %c0_2 = arith.constant 0 : index
    %1 = vector.load %arg2[%c0_1, %c0_2] : memref<32x128xbf16, #tpu.memory_space<vmem>>, vector<32x128xbf16>
    %cst = arith.constant dense<0.000000e+00> : vector<32x128xf32>
    %2 = tpu.matmul %0, %1, %cst {dimension_numbers = #tpu.dot_dimension_numbers<[1], [0], [0], [1], [0, 0, 1, 1], [], []>} : vector<32x32xbf16>, vector<32x128xbf16>, vector<32x128xf32> -> vector<32x128xf32>
    %3 = arith.truncf %2 : vector<32x128xf32> to vector<32x128xbf16>
    %c0_3 = arith.constant 0 : index
    %c0_4 = arith.constant 0 : index
    %4 = vector.load %arg3[%c0_3, %c0_4] : memref<1x128xbf16, #tpu.memory_space<vmem>>, vector<1x128xbf16>
    %5 = vector.broadcast %4 : vector<1x128xbf16> to vector<32x128xbf16>
    %6 = arith.addf %3, %5 : vector<32x128xbf16>
    %cst_5 = arith.constant 5.000000e-01 : bf16
    %7 = vector.broadcast %cst_5 : bf16 to vector<32x128xbf16>
    %8 = arith.mulf %7, %6 : vector<32x128xbf16>
    %cst_6 = arith.constant 4.467770e-02 : bf16
    %9 = vector.broadcast %cst_6 : bf16 to vector<32x128xbf16>
    %10 = arith.mulf %9, %6 : vector<32x128xbf16>
    %11 = arith.mulf %10, %6 : vector<32x128xbf16>
    %12 = arith.mulf %11, %6 : vector<32x128xbf16>
    %13 = arith.addf %6, %12 : vector<32x128xbf16>
    %cst_7 = arith.constant 7.968750e-01 : bf16
    %14 = vector.broadcast %cst_7 : bf16 to vector<32x128xbf16>
    %15 = arith.mulf %14, %13 : vector<32x128xbf16>
    %16 = math.tanh %15 : vector<32x128xbf16>
    %cst_8 = arith.constant 1.000000e+00 : bf16
    %17 = vector.broadcast %cst_8 : bf16 to vector<32x128xbf16>
    %18 = arith.addf %17, %16 : vector<32x128xbf16>
    %19 = arith.mulf %8, %18 : vector<32x128xbf16>
    %c0_i32 = arith.constant 0 : i32
    %20 = arith.index_cast %c0_i32 : i32 to index
    %c0_9 = arith.constant 0 : index
    %c0_10 = arith.constant 0 : index
    %21 = vector.load %arg4[%20, %c0_9, %c0_10] : memref<3x128x128xbf16, #tpu.memory_space<vmem>>, vector<1x128x128xbf16>
    %22 = vector.shape_cast %21 : vector<1x128x128xbf16> to vector<128x128xbf16>
    %cst_11 = arith.constant dense<0.000000e+00> : vector<32x128xf32>
    %23 = tpu.matmul %19, %22, %cst_11 {dimension_numbers = #tpu.dot_dimension_numbers<[1], [0], [0], [1], [0, 0, 1, 1], [], []>} : vector<32x128xbf16>, vector<128x128xbf16>, vector<32x128xf32> -> vector<32x128xf32>
    %24 = arith.truncf %23 : vector<32x128xf32> to vector<32x128xbf16>
    %25 = arith.index_cast %c0_i32 : i32 to index
    %c0_12 = arith.constant 0 : index
    %c0_13 = arith.constant 0 : index
    %26 = vector.load %arg5[%25, %c0_12, %c0_13] : memref<3x1x128xbf16, #tpu.memory_space<vmem>>, vector<1x1x128xbf16>
    %27 = vector.shape_cast %26 : vector<1x1x128xbf16> to vector<1x128xbf16>
    %28 = vector.broadcast %27 : vector<1x128xbf16> to vector<32x128xbf16>
    %29 = arith.addf %24, %28 : vector<32x128xbf16>
    %cst_14 = arith.constant 5.000000e-01 : bf16
    %30 = vector.broadcast %cst_14 : bf16 to vector<32x128xbf16>
    %31 = arith.mulf %30, %29 : vector<32x128xbf16>
    %cst_15 = arith.constant 4.467770e-02 : bf16
    %32 = vector.broadcast %cst_15 : bf16 to vector<32x128xbf16>
    %33 = arith.mulf %32, %29 : vector<32x128xbf16>
    %34 = arith.mulf %33, %29 : vector<32x128xbf16>
    %35 = arith.mulf %34, %29 : vector<32x128xbf16>
    %36 = arith.addf %29, %35 : vector<32x128xbf16>
    %cst_16 = arith.constant 7.968750e-01 : bf16
    %37 = vector.broadcast %cst_16 : bf16 to vector<32x128xbf16>
    %38 = arith.mulf %37, %36 : vector<32x128xbf16>
    %39 = math.tanh %38 : vector<32x128xbf16>
    %cst_17 = arith.constant 1.000000e+00 : bf16
    %40 = vector.broadcast %cst_17 : bf16 to vector<32x128xbf16>
    %41 = arith.addf %40, %39 : vector<32x128xbf16>
    %42 = arith.mulf %31, %41 : vector<32x128xbf16>
    %43 = arith.addf %42, %19 : vector<32x128xbf16>
    %c1_i32 = arith.constant 1 : i32
    %44 = arith.index_cast %c1_i32 : i32 to index
    %c0_18 = arith.constant 0 : index
    %c0_19 = arith.constant 0 : index
    %45 = vector.load %arg4[%44, %c0_18, %c0_19] : memref<3x128x128xbf16, #tpu.memory_space<vmem>>, vector<1x128x128xbf16>
    %46 = vector.shape_cast %45 : vector<1x128x128xbf16> to vector<128x128xbf16>
    %cst_20 = arith.constant dense<0.000000e+00> : vector<32x128xf32>
    %47 = tpu.matmul %43, %46, %cst_20 {dimension_numbers = #tpu.dot_dimension_numbers<[1], [0], [0], [1], [0, 0, 1, 1], [], []>} : vector<32x128xbf16>, vector<128x128xbf16>, vector<32x128xf32> -> vector<32x128xf32>
    %48 = arith.truncf %47 : vector<32x128xf32> to vector<32x128xbf16>
    %49 = arith.index_cast %c1_i32 : i32 to index
    %c0_21 = arith.constant 0 : index
    %c0_22 = arith.constant 0 : index
    %50 = vector.load %arg5[%49, %c0_21, %c0_22] : memref<3x1x128xbf16, #tpu.memory_space<vmem>>, vector<1x1x128xbf16>
    %51 = vector.shape_cast %50 : vector<1x1x128xbf16> to vector<1x128xbf16>
    %52 = vector.broadcast %51 : vector<1x128xbf16> to vector<32x128xbf16>
    %53 = arith.addf %48, %52 : vector<32x128xbf16>
    %cst_23 = arith.constant 5.000000e-01 : bf16
    %54 = vector.broadcast %cst_23 : bf16 to vector<32x128xbf16>
    %55 = arith.mulf %54, %53 : vector<32x128xbf16>
    %cst_24 = arith.constant 4.467770e-02 : bf16
    %56 = vector.broadcast %cst_24 : bf16 to vector<32x128xbf16>
    %57 = arith.mulf %56, %53 : vector<32x128xbf16>
    %58 = arith.mulf %57, %53 : vector<32x128xbf16>
    %59 = arith.mulf %58, %53 : vector<32x128xbf16>
    %60 = arith.addf %53, %59 : vector<32x128xbf16>
    %cst_25 = arith.constant 7.968750e-01 : bf16
    %61 = vector.broadcast %cst_25 : bf16 to vector<32x128xbf16>
    %62 = arith.mulf %61, %60 : vector<32x128xbf16>
    %63 = math.tanh %62 : vector<32x128xbf16>
    %cst_26 = arith.constant 1.000000e+00 : bf16
    %64 = vector.broadcast %cst_26 : bf16 to vector<32x128xbf16>
    %65 = arith.addf %64, %63 : vector<32x128xbf16>
    %66 = arith.mulf %55, %65 : vector<32x128xbf16>
    %67 = arith.addf %66, %43 : vector<32x128xbf16>
    %c2_i32 = arith.constant 2 : i32
    %68 = arith.index_cast %c2_i32 : i32 to index
    %c0_27 = arith.constant 0 : index
    %c0_28 = arith.constant 0 : index
    %69 = vector.load %arg4[%68, %c0_27, %c0_28] : memref<3x128x128xbf16, #tpu.memory_space<vmem>>, vector<1x128x128xbf16>
    %70 = vector.shape_cast %69 : vector<1x128x128xbf16> to vector<128x128xbf16>
    %cst_29 = arith.constant dense<0.000000e+00> : vector<32x128xf32>
    %71 = tpu.matmul %67, %70, %cst_29 {dimension_numbers = #tpu.dot_dimension_numbers<[1], [0], [0], [1], [0, 0, 1, 1], [], []>} : vector<32x128xbf16>, vector<128x128xbf16>, vector<32x128xf32> -> vector<32x128xf32>
    %72 = arith.truncf %71 : vector<32x128xf32> to vector<32x128xbf16>
    %73 = arith.index_cast %c2_i32 : i32 to index
    %c0_30 = arith.constant 0 : index
    %c0_31 = arith.constant 0 : index
    %74 = vector.load %arg5[%73, %c0_30, %c0_31] : memref<3x1x128xbf16, #tpu.memory_space<vmem>>, vector<1x1x128xbf16>
    %75 = vector.shape_cast %74 : vector<1x1x128xbf16> to vector<1x128xbf16>
    %76 = vector.broadcast %75 : vector<1x128xbf16> to vector<32x128xbf16>
    %77 = arith.addf %72, %76 : vector<32x128xbf16>
    %cst_32 = arith.constant 5.000000e-01 : bf16
    %78 = vector.broadcast %cst_32 : bf16 to vector<32x128xbf16>
    %79 = arith.mulf %78, %77 : vector<32x128xbf16>
    %cst_33 = arith.constant 4.467770e-02 : bf16
    %80 = vector.broadcast %cst_33 : bf16 to vector<32x128xbf16>
    %81 = arith.mulf %80, %77 : vector<32x128xbf16>
    %82 = arith.mulf %81, %77 : vector<32x128xbf16>
    %83 = arith.mulf %82, %77 : vector<32x128xbf16>
    %84 = arith.addf %77, %83 : vector<32x128xbf16>
    %cst_34 = arith.constant 7.968750e-01 : bf16
    %85 = vector.broadcast %cst_34 : bf16 to vector<32x128xbf16>
    %86 = arith.mulf %85, %84 : vector<32x128xbf16>
    %87 = math.tanh %86 : vector<32x128xbf16>
    %cst_35 = arith.constant 1.000000e+00 : bf16
    %88 = vector.broadcast %cst_35 : bf16 to vector<32x128xbf16>
    %89 = arith.addf %88, %87 : vector<32x128xbf16>
    %90 = arith.mulf %79, %89 : vector<32x128xbf16>
    %91 = arith.addf %90, %67 : vector<32x128xbf16>
    %c3_i32 = arith.constant 3 : i32
    %c0_36 = arith.constant 0 : index
    %c0_37 = arith.constant 0 : index
    %92 = vector.load %arg6[%c0_36, %c0_37] : memref<128x32xbf16, #tpu.memory_space<vmem>>, vector<128x32xbf16>
    %cst_38 = arith.constant dense<0.000000e+00> : vector<32x32xf32>
    %93 = tpu.matmul %91, %92, %cst_38 {dimension_numbers = #tpu.dot_dimension_numbers<[1], [0], [0], [1], [0, 0, 1, 1], [], []>} : vector<32x128xbf16>, vector<128x32xbf16>, vector<32x32xf32> -> vector<32x32xf32>
    %94 = arith.truncf %93 : vector<32x32xf32> to vector<32x32xbf16>
    %c0_39 = arith.constant 0 : index
    %c0_40 = arith.constant 0 : index
    %95 = vector.load %arg7[%c0_39, %c0_40] : memref<1x32xbf16, #tpu.memory_space<vmem>>, vector<1x32xbf16>
    %96 = vector.broadcast %95 : vector<1x32xbf16> to vector<32x32xbf16>
    %97 = arith.addf %94, %96 : vector<32x32xbf16>
    %cst_41 = arith.constant 5.000000e-01 : bf16
    %98 = vector.broadcast %cst_41 : bf16 to vector<32x32xbf16>
    %99 = arith.mulf %98, %97 : vector<32x32xbf16>
    %cst_42 = arith.constant 4.467770e-02 : bf16
    %100 = vector.broadcast %cst_42 : bf16 to vector<32x32xbf16>
    %101 = arith.mulf %100, %97 : vector<32x32xbf16>
    %102 = arith.mulf %101, %97 : vector<32x32xbf16>
    %103 = arith.mulf %102, %97 : vector<32x32xbf16>
    %104 = arith.addf %97, %103 : vector<32x32xbf16>
    %cst_43 = arith.constant 7.968750e-01 : bf16
    %105 = vector.broadcast %cst_43 : bf16 to vector<32x32xbf16>
    %106 = arith.mulf %105, %104 : vector<32x32xbf16>
    %107 = math.tanh %106 : vector<32x32xbf16>
    %cst_44 = arith.constant 1.000000e+00 : bf16
    %108 = vector.broadcast %cst_44 : bf16 to vector<32x32xbf16>
    %109 = arith.addf %108, %107 : vector<32x32xbf16>
    %110 = arith.mulf %99, %109 : vector<32x32xbf16>
    %111 = arith.addf %110, %0 : vector<32x32xbf16>
    %c0_45 = arith.constant 0 : index
    %c0_46 = arith.constant 0 : index
    %112 = vector.load %arg8[%c0_45, %c0_46] : memref<32x32xbf16, #tpu.memory_space<vmem>>, vector<32x32xbf16>
    tpu.vector_store %arg8[%c0_45, %c0_46], %111 {strides = array<i32>} : memref<32x32xbf16, #tpu.memory_space<vmem>>, vector<32x32xbf16>,
    return
  }
  func.func @transform_0(%arg0: i32) -> (i32, i32) {
    %c0_i32 = arith.constant 0 : i32
    %c0_i32_0 = arith.constant 0 : i32
    return %arg0, %c0_i32 : i32, i32
  }
  func.func @transform_1(%arg0: i32) -> (i32, i32) {
    %c0_i32 = arith.constant 0 : i32
    %c0_i32_0 = arith.constant 0 : i32
    %c0_i32_1 = arith.constant 0 : i32
    return %c0_i32, %c0_i32_0 : i32, i32
  }
  func.func @transform_2(%arg0: i32) -> (i32, i32) {
    %c0_i32 = arith.constant 0 : i32
    %c0_i32_0 = arith.constant 0 : i32
    %c0_i32_1 = arith.constant 0 : i32
    return %c0_i32, %c0_i32_0 : i32, i32
  }
  func.func @transform_3(%arg0: i32) -> (i32, i32, i32) {
    %c0_i32 = arith.constant 0 : i32
    %c0_i32_0 = arith.constant 0 : i32
    %c0_i32_1 = arith.constant 0 : i32
    %c0_i32_2 = arith.constant 0 : i32
    return %c0_i32, %c0_i32_0, %c0_i32_1 : i32, i32, i32
  }
  func.func @transform_4(%arg0: i32) -> (i32, i32, i32) {
    %c0_i32 = arith.constant 0 : i32
    %c0_i32_0 = arith.constant 0 : i32
    %c0_i32_1 = arith.constant 0 : i32
    %c0_i32_2 = arith.constant 0 : i32
    return %c0_i32, %c0_i32_0, %c0_i32_1 : i32, i32, i32
  }
  func.func @transform_5(%arg0: i32) -> (i32, i32) {
    %c0_i32 = arith.constant 0 : i32
    %c0_i32_0 = arith.constant 0 : i32
    %c0_i32_1 = arith.constant 0 : i32
    return %c0_i32, %c0_i32_0 : i32, i32
  }
  func.func @transform_6(%arg0: i32) -> (i32, i32) {
    %c0_i32 = arith.constant 0 : i32
    %c0_i32_0 = arith.constant 0 : i32
    %c0_i32_1 = arith.constant 0 : i32
    return %c0_i32, %c0_i32_0 : i32, i32
  }
  func.func @transform_7(%arg0: i32) -> (i32, i32) {
    %c0_i32 = arith.constant 0 : i32
    %c0_i32_0 = arith.constant 0 : i32
    return %arg0, %c0_i32 : i32, i32
  }
}

module attributes {stable_mosaic.version = 11 : i64} {
  func.func @linear_residual_kernel(%arg0: i32, %arg1: memref<32x32xbf16, #tpu.memory_space<vmem>>, %arg2: memref<32x128xbf16, #tpu.memory_space<vmem>>, %arg3: memref<1x128xbf16, #tpu.memory_space<vmem>>, %arg4: memref<3x128x128xbf16, #tpu.memory_space<vmem>>, %arg5: memref<3x1x128xbf16, #tpu.memory_space<vmem>>, %arg6: memref<128x32xbf16, #tpu.memory_space<vmem>>, %arg7: memref<1x32xbf16, #tpu.memory_space<vmem>>, %arg8: memref<32x32xbf16, #tpu.memory_space<vmem>>) attributes {dimension_semantics = [#tpu.dimension_semantics<parallel>], iteration_bounds = array<i64: 2>, scalar_prefetch = 0 : i64, scratch_operands = 0 : i64, tpu.core_type = #tpu.core_type<tc>, window_params = [{transform_indices = @transform_0, window_bounds = array<i64: 32, 32>}, {pipeline_mode = #tpu.pipeline_mode<synchronous>, transform_indices = @transform_1, window_bounds = array<i64: 32, 128>}, {pipeline_mode = #tpu.pipeline_mode<synchronous>, transform_indices = @transform_2, window_bounds = array<i64: 1, 128>}, {pipeline_mode = #tpu.pipeline_mode<synchronous>, transform_indices = @transform_3, window_bounds = array<i64: 3, 128, 128>}, {pipeline_mode = #tpu.pipeline_mode<synchronous>, transform_indices = @transform_4, window_bounds = array<i64: 3, 1, 128>}, {pipeline_mode = #tpu.pipeline_mode<synchronous>, transform_indices = @transform_5, window_bounds = array<i64: 128, 32>}, {pipeline_mode = #tpu.pipeline_mode<synchronous>, transform_indices = @transform_6, window_bounds = array<i64: 1, 32>}, {transform_indices = @transform_7, window_bounds = array<i64: 32, 32>}]} {
    %c0 = arith.constant 0 : index
    %c0_0 = arith.constant 0 : index
    %0 = vector.load %arg1[%c0, %c0_0] : memref<32x32xbf16, #tpu.memory_space<vmem>>, vector<32x32xbf16>
    %c0_1 = arith.constant 0 : index
    %c0_2 = arith.constant 0 : index
    %1 = vector.load %arg2[%c0_1, %c0_2] : memref<32x128xbf16, #tpu.memory_space<vmem>>, vector<32x128xbf16>
    %cst = arith.constant dense<0.000000e+00> : vector<32x128xf32>
    %2 = tpu.matmul %0, %1, %cst {dimension_numbers = #tpu.dot_dimension_numbers<[1], [0], [0], [1], [0, 0, 1, 1], [], []>} : vector<32x32xbf16>, vector<32x128xbf16>, vector<32x128xf32> -> vector<32x128xf32>
    %3 = arith.truncf %2 : vector<32x128xf32> to vector<32x128xbf16>
    %c0_3 = arith.constant 0 : index
    %c0_4 = arith.constant 0 : index
    %4 = vector.load %arg3[%c0_3, %c0_4] : memref<1x128xbf16, #tpu.memory_space<vmem>>, vector<1x128xbf16>
    %5 = vector.broadcast %4 : vector<1x128xbf16> to vector<32x128xbf16>
    %6 = arith.addf %3, %5 : vector<32x128xbf16>
    %cst_5 = arith.constant 5.000000e-01 : bf16
    %7 = vector.broadcast %cst_5 : bf16 to vector<32x128xbf16>
    %8 = arith.mulf %7, %6 : vector<32x128xbf16>
    %cst_6 = arith.constant 4.467770e-02 : bf16
    %9 = vector.broadcast %cst_6 : bf16 to vector<32x128xbf16>
    %10 = arith.mulf %9, %6 : vector<32x128xbf16>
    %11 = arith.mulf %10, %6 : vector<32x128xbf16>
    %12 = arith.mulf %11, %6 : vector<32x128xbf16>
    %13 = arith.addf %6, %12 : vector<32x128xbf16>
    %cst_7 = arith.constant 7.968750e-01 : bf16
    %14 = vector.broadcast %cst_7 : bf16 to vector<32x128xbf16>
    %15 = arith.mulf %14, %13 : vector<32x128xbf16>
    %16 = math.tanh %15 : vector<32x128xbf16>
    %cst_8 = arith.constant 1.000000e+00 : bf16
    %17 = vector.broadcast %cst_8 : bf16 to vector<32x128xbf16>
    %18 = arith.addf %17, %16 : vector<32x128xbf16>
    %19 = arith.mulf %8, %18 : vector<32x128xbf16>
    %c0_i32 = arith.constant 0 : i32
    %20 = arith.index_cast %c0_i32 : i32 to index
    %c0_9 = arith.constant 0 : index
    %c0_10 = arith.constant 0 : index
    %21 = vector.load %arg4[%20, %c0_9, %c0_10] : memref<3x128x128xbf16, #tpu.memory_space<vmem>>, vector<1x128x128xbf16>
    %22 = vector.shape_cast %21 : vector<1x128x128xbf16> to vector<128x128xbf16>
    %cst_11 = arith.constant dense<0.000000e+00> : vector<32x128xf32>
    %23 = tpu.matmul %19, %22, %cst_11 {dimension_numbers = #tpu.dot_dimension_numbers<[1], [0], [0], [1], [0, 0, 1, 1], [], []>} : vector<32x128xbf16>, vector<128x128xbf16>, vector<32x128xf32> -> vector<32x128xf32>
    %24 = arith.truncf %23 : vector<32x128xf32> to vector<32x128xbf16>
    %25 = arith.index_cast %c0_i32 : i32 to index
    %c0_12 = arith.constant 0 : index
    %c0_13 = arith.constant 0 : index
    %26 = vector.load %arg5[%25, %c0_12, %c0_13] : memref<3x1x128xbf16, #tpu.memory_space<vmem>>, vector<1x1x128xbf16>
    %27 = vector.shape_cast %26 : vector<1x1x128xbf16> to vector<1x128xbf16>
    %28 = vector.broadcast %27 : vector<1x128xbf16> to vector<32x128xbf16>
    %29 = arith.addf %24, %28 : vector<32x128xbf16>
    %cst_14 = arith.constant 5.000000e-01 : bf16
    %30 = vector.broadcast %cst_14 : bf16 to vector<32x128xbf16>
    %31 = arith.mulf %30, %29 : vector<32x128xbf16>
    %cst_15 = arith.constant 4.467770e-02 : bf16
    %32 = vector.broadcast %cst_15 : bf16 to vector<32x128xbf16>
    %33 = arith.mulf %32, %29 : vector<32x128xbf16>
    %34 = arith.mulf %33, %29 : vector<32x128xbf16>
    %35 = arith.mulf %34, %29 : vector<32x128xbf16>
    %36 = arith.addf %29, %35 : vector<32x128xbf16>
    %cst_16 = arith.constant 7.968750e-01 : bf16
    %37 = vector.broadcast %cst_16 : bf16 to vector<32x128xbf16>
    %38 = arith.mulf %37, %36 : vector<32x128xbf16>
    %39 = math.tanh %38 : vector<32x128xbf16>
    %cst_17 = arith.constant 1.000000e+00 : bf16
    %40 = vector.broadcast %cst_17 : bf16 to vector<32x128xbf16>
    %41 = arith.addf %40, %39 : vector<32x128xbf16>
    %42 = arith.mulf %31, %41 : vector<32x128xbf16>
    %43 = arith.addf %42, %19 : vector<32x128xbf16>
    %c1_i32 = arith.constant 1 : i32
    %44 = arith.index_cast %c1_i32 : i32 to index
    %c0_18 = arith.constant 0 : index
    %c0_19 = arith.constant 0 : index
    %45 = vector.load %arg4[%44, %c0_18, %c0_19] : memref<3x128x128xbf16, #tpu.memory_space<vmem>>, vector<1x128x128xbf16>
    %46 = vector.shape_cast %45 : vector<1x128x128xbf16> to vector<128x128xbf16>
    %cst_20 = arith.constant dense<0.000000e+00> : vector<32x128xf32>
    %47 = tpu.matmul %43, %46, %cst_20 {dimension_numbers = #tpu.dot_dimension_numbers<[1], [0], [0], [1], [0, 0, 1, 1], [], []>} : vector<32x128xbf16>, vector<128x128xbf16>, vector<32x128xf32> -> vector<32x128xf32>
    %48 = arith.truncf %47 : vector<32x128xf32> to vector<32x128xbf16>
    %49 = arith.index_cast %c1_i32 : i32 to index
    %c0_21 = arith.constant 0 : index
    %c0_22 = arith.constant 0 : index
    %50 = vector.load %arg5[%49, %c0_21, %c0_22] : memref<3x1x128xbf16, #tpu.memory_space<vmem>>, vector<1x1x128xbf16>
    %51 = vector.shape_cast %50 : vector<1x1x128xbf16> to vector<1x128xbf16>
    %52 = vector.broadcast %51 : vector<1x128xbf16> to vector<32x128xbf16>
    %53 = arith.addf %48, %52 : vector<32x128xbf16>
    %cst_23 = arith.constant 5.000000e-01 : bf16
    %54 = vector.broadcast %cst_23 : bf16 to vector<32x128xbf16>
    %55 = arith.mulf %54, %53 : vector<32x128xbf16>
    %cst_24 = arith.constant 4.467770e-02 : bf16
    %56 = vector.broadcast %cst_24 : bf16 to vector<32x128xbf16>
    %57 = arith.mulf %56, %53 : vector<32x128xbf16>
    %58 = arith.mulf %57, %53 : vector<32x128xbf16>
    %59 = arith.mulf %58, %53 : vector<32x128xbf16>
    %60 = arith.addf %53, %59 : vector<32x128xbf16>
    %cst_25 = arith.constant 7.968750e-01 : bf16
    %61 = vector.broadcast %cst_25 : bf16 to vector<32x128xbf16>
    %62 = arith.mulf %61, %60 : vector<32x128xbf16>
    %63 = math.tanh %62 : vector<32x128xbf16>
    %cst_26 = arith.constant 1.000000e+00 : bf16
    %64 = vector.broadcast %cst_26 : bf16 to vector<32x128xbf16>
    %65 = arith.addf %64, %63 : vector<32x128xbf16>
    %66 = arith.mulf %55, %65 : vector<32x128xbf16>
    %67 = arith.addf %66, %43 : vector<32x128xbf16>
    %c2_i32 = arith.constant 2 : i32
    %68 = arith.index_cast %c2_i32 : i32 to index
    %c0_27 = arith.constant 0 : index
    %c0_28 = arith.constant 0 : index
    %69 = vector.load %arg4[%68, %c0_27, %c0_28] : memref<3x128x128xbf16, #tpu.memory_space<vmem>>, vector<1x128x128xbf16>
    %70 = vector.shape_cast %69 : vector<1x128x128xbf16> to vector<128x128xbf16>
    %cst_29 = arith.constant dense<0.000000e+00> : vector<32x128xf32>
    %71 = tpu.matmul %67, %70, %cst_29 {dimension_numbers = #tpu.dot_dimension_numbers<[1], [0], [0], [1], [0, 0, 1, 1], [], []>} : vector<32x128xbf16>, vector<128x128xbf16>, vector<32x128xf32> -> vector<32x128xf32>
    %72 = arith.truncf %71 : vector<32x128xf32> to vector<32x128xbf16>
    %73 = arith.index_cast %c2_i32 : i32 to index
    %c0_30 = arith.constant 0 : index
    %c0_31 = arith.constant 0 : index
    %74 = vector.load %arg5[%73, %c0_30, %c0_31] : memref<3x1x128xbf16, #tpu.memory_space<vmem>>, vector<1x1x128xbf16>
    %75 = vector.shape_cast %74 : vector<1x1x128xbf16> to vector<1x128xbf16>
    %76 = vector.broadcast %75 : vector<1x128xbf16> to vector<32x128xbf16>
    %77 = arith.addf %72, %76 : vector<32x128xbf16>
    %cst_32 = arith.constant 5.000000e-01 : bf16
    %78 = vector.broadcast %cst_32 : bf16 to vector<32x128xbf16>
    %79 = arith.mulf %78, %77 : vector<32x128xbf16>
    %cst_33 = arith.constant 4.467770e-02 : bf16
    %80 = vector.broadcast %cst_33 : bf16 to vector<32x128xbf16>
    %81 = arith.mulf %80, %77 : vector<32x128xbf16>
    %82 = arith.mulf %81, %77 : vector<32x128xbf16>
    %83 = arith.mulf %82, %77 : vector<32x128xbf16>
    %84 = arith.addf %77, %83 : vector<32x128xbf16>
    %cst_34 = arith.constant 7.968750e-01 : bf16
    %85 = vector.broadcast %cst_34 : bf16 to vector<32x128xbf16>
    %86 = arith.mulf %85, %84 : vector<32x128xbf16>
    %87 = math.tanh %86 : vector<32x128xbf16>
    %cst_35 = arith.constant 1.000000e+00 : bf16
    %88 = vector.broadcast %cst_35 : bf16 to vector<32x128xbf16>
    %89 = arith.addf %88, %87 : vector<32x128xbf16>
    %90 = arith.mulf %79, %89 : vector<32x128xbf16>
    %91 = arith.addf %90, %67 : vector<32x128xbf16>
    %c3_i32 = arith.constant 3 : i32
    %c0_36 = arith.constant 0 : index
    %c0_37 = arith.constant 0 : index
    %92 = vector.load %arg6[%c0_36, %c0_37] : memref<128x32xbf16, #tpu.memory_space<vmem>>, vector<128x32xbf16>
    %cst_38 = arith.constant dense<0.000000e+00> : vector<32x32xf32>
    %93 = tpu.matmul %91, %92, %cst_38 {dimension_numbers = #tpu.dot_dimension_numbers<[1], [0], [0], [1], [0, 0, 1, 1], [], []>} : vector<32x128xbf16>, vector<128x32xbf16>, vector<32x32xf32> -> vector<32x32xf32>
    %94 = arith.truncf %93 : vector<32x32xf32> to vector<32x32xbf16>
    %c0_39 = arith.constant 0 : index
    %c0_40 = arith.constant 0 : index
    %95 = vector.load %arg7[%c0_39, %c0_40] : memref<1x32xbf16, #tpu.memory_space<vmem>>, vector<1x32xbf16>
    %96 = vector.broadcast %95 : vector<1x32xbf16> to vector<32x32xbf16>
    %97 = arith.addf %94, %96 : vector<32x32xbf16>
    %cst_41 = arith.constant 5.000000e-01 : bf16
    %98 = vector.broadcast %cst_41 : bf16 to vector<32x32xbf16>
    %99 = arith.mulf %98, %97 : vector<32x32xbf16>
    %cst_42 = arith.constant 4.467770e-02 : bf16
    %100 = vector.broadcast %cst_42 : bf16 to vector<32x32xbf16>
    %101 = arith.mulf %100, %97 : vector<32x32xbf16>
    %102 = arith.mulf %101, %97 : vector<32x32xbf16>
    %103 = arith.mulf %102, %97 : vector<32x32xbf16>
    %104 = arith.addf %97, %103 : vector<32x32xbf16>
    %cst_43 = arith.constant 7.968750e-01 : bf16
    %105 = vector.broadcast %cst_43 : bf16 to vector<32x32xbf16>
    %106 = arith.mulf %105, %104 : vector<32x32xbf16>
    %107 = math.tanh %106 : vector<32x32xbf16>
    %cst_44 = arith.constant 1.000000e+00 : bf16
    %108 = vector.broadcast %cst_44 : bf16 to vector<32x32xbf16>
    %109 = arith.addf %108, %107 : vector<32x32xbf16>
    %110 = arith.mulf %99, %109 : vector<32x32xbf16>
    %111 = arith.addf %110, %0 : vector<32x32xbf16>
    %c0_45 = arith.constant 0 : index
    %c0_46 = arith.constant 0 : index
    %112 = vector.load %arg8[%c0_45, %c0_46] : memref<32x32xbf16, #tpu.memory_space<vmem>>, vector<32x32xbf16>
    tpu.vector_store %arg8[%c0_45, %c0_46], %111 {strides = array<i32>} : memref<32x32xbf16, #tpu.memory_space<vmem>>, vector<32x32xbf16>,
    return
  }
  func.func @transform_0(%arg0: i32) -> (i32, i32) {
    %c0_i32 = arith.constant 0 : i32
    %c0_i32_0 = arith.constant 0 : i32
    return %arg0, %c0_i32 : i32, i32
  }
  func.func @transform_1(%arg0: i32) -> (i32, i32) {
    %c0_i32 = arith.constant 0 : i32
    %c0_i32_0 = arith.constant 0 : i32
    %c0_i32_1 = arith.constant 0 : i32
    return %c0_i32, %c0_i32_0 : i32, i32
  }
  func.func @transform_2(%arg0: i32) -> (i32, i32) {
    %c0_i32 = arith.constant 0 : i32
    %c0_i32_0 = arith.constant 0 : i32
    %c0_i32_1 = arith.constant 0 : i32
    return %c0_i32, %c0_i32_0 : i32, i32
  }
  func.func @transform_3(%arg0: i32) -> (i32, i32, i32) {
    %c0_i32 = arith.constant 0 : i32
    %c0_i32_0 = arith.constant 0 : i32
    %c0_i32_1 = arith.constant 0 : i32
    %c0_i32_2 = arith.constant 0 : i32
    return %c0_i32, %c0_i32_0, %c0_i32_1 : i32, i32, i32
  }
  func.func @transform_4(%arg0: i32) -> (i32, i32, i32) {
    %c0_i32 = arith.constant 0 : i32
    %c0_i32_0 = arith.constant 0 : i32
    %c0_i32_1 = arith.constant 0 : i32
    %c0_i32_2 = arith.constant 0 : i32
    return %c0_i32, %c0_i32_0, %c0_i32_1 : i32, i32, i32
  }
  func.func @transform_5(%arg0: i32) -> (i32, i32) {
    %c0_i32 = arith.constant 0 : i32
    %c0_i32_0 = arith.constant 0 : i32
    %c0_i32_1 = arith.constant 0 : i32
    return %c0_i32, %c0_i32_0 : i32, i32
  }
  func.func @transform_6(%arg0: i32) -> (i32, i32) {
    %c0_i32 = arith.constant 0 : i32
    %c0_i32_0 = arith.constant 0 : i32
    %c0_i32_1 = arith.constant 0 : i32
    return %c0_i32, %c0_i32_0 : i32, i32
  }
  func.func @transform_7(%arg0: i32) -> (i32, i32) {
    %c0_i32 = arith.constant 0 : i32
    %c0_i32_0 = arith.constant 0 : i32
    return %arg0, %c0_i32 : i32, i32
  }
}

</mosaic_0001>

<llo_original>
// kernel: tpu_custom_call.1
$region0: #{tpu_custom_call.1}
  #allocation0 [shape = 'u32[]', space=smem, size = 0x4, offset = 0x4, fixed_abs, tag = 'smem constant byte address 0x4 - core index']
  #allocation1 [shape = 'u32[144,128]{1,0:T(1,128)}', space=vmem, size = 0x12000, scoped, tag = 'internal scratch']
  %s0 = inlined_call_operand.vmem [shape: bf16[64,32], index: 0, kind: input, shape index: {}]
  %s1 = inlined_call_operand.vmem [shape: bf16[32,128], index: 1, kind: input, shape index: {}]
  %s2 = inlined_call_operand.vmem [shape: bf16[1,128], index: 2, kind: input, shape index: {}]
  %s3 = inlined_call_operand.hbm [shape: bf16[3,128,128], index: 3, kind: input, shape index: {}]
  %s4 = inlined_call_operand.vmem [shape: bf16[3,1,128], index: 4, kind: input, shape index: {}]
  %s5 = inlined_call_operand.vmem [shape: bf16[128,32], index: 5, kind: input, shape index: {}]
  %s6 = inlined_call_operand.vmem [shape: bf16[1,32], index: 6, kind: input, shape index: {}]
  %s7 = inlined_call_operand.vmem [shape: bf16[64,32], index: 7, kind: output, shape index: {}]
  %s8 = sld [smem:[#allocation0]]
  $region65: #{tpu_custom_call.1} parent=0
    _
  %s10 = ssub.s32 1, %s8
  %s11 = scalar_select 0, %s10, %s8
  $region1: #{tpu_custom_call.1} parent=0
    #allocation2 [shape = 'u8[98304]{0}', space=vmem, size = 0x18000, scoped, tag = 'input window, operand 3, single buffered']
    #allocation3 [shape = 's32[2]{0}', space=sflag, size = 0x8, scoped, tag = 'scoped memory for tpu_custom_call.1']
    %12 = vsyncpa [#allocation3], 0
    loop: start=0, step=1, limit=4
    $region2: #{tpu_custom_call.1} parent=1 // loop_pre_header
      _
    $region3: #{tpu_custom_call.1} parent=1 // loop_header
      %s14 = sphi 0, %s18
      %p15 = scmp.ge.s32.totalorder %s14, 4
      %s24 = sphi 0, %s26
      %s27 = sphi 0, %s24
      %s28 = sphi 0, %s27
      %s44 = sphi 0, %s28
      %s48 = sphi 0, %s48
      %s50 = sphi 0, %s48
      %s51 = sphi 0, %s50
      %s65 = sphi 0, %s51
      %s69 = sphi 0, %s69
      %s71 = sphi 0, %s69
      %s72 = sphi 0, %s71
      %s86 = sphi 0, %s72
      %s90 = sphi 0, %s90
      %s92 = sphi 0, %s90
      %s93 = sphi 0, %s92
      %s107 = sphi 0, %s93
      %s111 = sphi 0, %s111
      %s113 = sphi 0, %s111
      %s114 = sphi 0, %s113
      %s128 = sphi 0, %s114
      %s132 = sphi 0, %s132
      %s134 = sphi 0, %s132
      %s135 = sphi 0, %s134
      %s149 = sphi 0, %s135
      %s153 = sphi 0, %s153
      %s155 = sphi 0, %s153
      %s156 = sphi 0, %s155
      %s170 = sphi 0, %s156
      %s176 = sphi 0, %s178
      %s179 = sphi 0, %s176
      %s180 = sphi 0, %s179
      %s196 = sphi 0, %s180
    $region4: #{tpu_custom_call.1} parent=1 // loop_header_branch
      %17 = sbr.rel (%p15) target = $region8
    $region5: #{tpu_custom_call.1} parent=1 // loop_body
      %s19 = ssub.s32 %s14, 1
      %s20 = ssub.s32 %s14, 2
      %s21 = sadd.s32 %s14, 1
      %s22 = ssub.s32 %s14, %s21
      %p23 = scmp.eq.s32.totalorder %s22, 0
      %s25 = sadd.s32 %s24, 1
      %s26 = scalar_select %p23, %s24, %s25
      %p29 = pneg %p23
      %p30 = scmp.eq.s32.totalorder %s14, 1
      %p31 = por %p29, %p30
      %p32 = scmp.ne.s32.totalorder %s24, %s27
      %p33 = scmp.eq.s32.totalorder %s14, 0
      %p34 = por %p32, %p33
      %p35 = scmp.ne.s32.totalorder %s24, %s27
      %p36 = scmp.eq.s32.totalorder %s19, 1
      %p37 = por %p35, %p36
      %p38 = scmp.ne.s32.totalorder %s27, %s28
      %p39 = scmp.eq.s32.totalorder %s19, 0
      %p40 = por %p38, %p39
      %p41 = scmp.ne.s32.totalorder %s27, %s28
      %p42 = scmp.eq.s32.totalorder %s20, 1
      %p43 = por %p41, %p42
      %p45 = scmp.ne.s32.totalorder %s28, %s44
      %p46 = scmp.eq.s32.totalorder %s20, 0
      %p47 = por %p45, %p46
      %s49 = sadd.s32 %s48, 1
      %p52 = scmp.eq.s32.totalorder %s14, 1
      %p53 = scmp.ne.s32.totalorder %s48, %s50
      %p54 = scmp.eq.s32.totalorder %s14, 0
      %p55 = por %p53, %p54
      %p56 = scmp.ne.s32.totalorder %s48, %s50
      %p57 = scmp.eq.s32.totalorder %s19, 1
      %p58 = por %p56, %p57
      %p59 = scmp.ne.s32.totalorder %s50, %s51
      %p60 = scmp.eq.s32.totalorder %s19, 0
      %p61 = por %p59, %p60
      %p62 = scmp.ne.s32.totalorder %s50, %s51
      %p63 = scmp.eq.s32.totalorder %s20, 1
      %p64 = por %p62, %p63
      %p66 = scmp.ne.s32.totalorder %s51, %s65
      %p67 = scmp.eq.s32.totalorder %s20, 0
      %p68 = por %p66, %p67
      %s70 = sadd.s32 %s69, 1
      %p73 = scmp.eq.s32.totalorder %s14, 1
      %p74 = scmp.ne.s32.totalorder %s69, %s71
      %p75 = scmp.eq.s32.totalorder %s14, 0
      %p76 = por %p74, %p75
      %p77 = scmp.ne.s32.totalorder %s69, %s71
      %p78 = scmp.eq.s32.totalorder %s19, 1
      %p79 = por %p77, %p78
      %p80 = scmp.ne.s32.totalorder %s71, %s72
      %p81 = scmp.eq.s32.totalorder %s19, 0
      %p82 = por %p80, %p81
      %p83 = scmp.ne.s32.totalorder %s71, %s72
      %p84 = scmp.eq.s32.totalorder %s20, 1
      %p85 = por %p83, %p84
      %p87 = scmp.ne.s32.totalorder %s72, %s86
      %p88 = scmp.eq.s32.totalorder %s20, 0
      %p89 = por %p87, %p88
      %s91 = sadd.s32 %s90, 1
      %p94 = scmp.eq.s32.totalorder %s14, 1
      %p95 = scmp.ne.s32.totalorder %s90, %s92
      %p96 = scmp.eq.s32.totalorder %s14, 0
      %p97 = por %p95, %p96
      %p98 = scmp.ne.s32.totalorder %s90, %s92
      %p99 = scmp.eq.s32.totalorder %s19, 1
      %p100 = por %p98, %p99
      %p101 = scmp.ne.s32.totalorder %s92, %s93
      %p102 = scmp.eq.s32.totalorder %s19, 0
      %p103 = por %p101, %p102
      %p104 = scmp.ne.s32.totalorder %s92, %s93
      %p105 = scmp.eq.s32.totalorder %s20, 1
      %p106 = por %p104, %p105
      %p108 = scmp.ne.s32.totalorder %s93, %s107
      %p109 = scmp.eq.s32.totalorder %s20, 0
      %p110 = por %p108, %p109
      %s112 = sadd.s32 %s111, 1
      %p115 = scmp.eq.s32.totalorder %s14, 1
      %p116 = scmp.ne.s32.totalorder %s111, %s113
      %p117 = scmp.eq.s32.totalorder %s14, 0
      %p118 = por %p116, %p117
      %p119 = scmp.ne.s32.totalorder %s111, %s113
      %p120 = scmp.eq.s32.totalorder %s19, 1
      %p121 = por %p119, %p120
      %p122 = scmp.ne.s32.totalorder %s113, %s114
      %p123 = scmp.eq.s32.totalorder %s19, 0
      %p124 = por %p122, %p123
      %p125 = scmp.ne.s32.totalorder %s113, %s114
      %p126 = scmp.eq.s32.totalorder %s20, 1
      %p127 = por %p125, %p126
      %p129 = scmp.ne.s32.totalorder %s114, %s128
      %p130 = scmp.eq.s32.totalorder %s20, 0
      %p131 = por %p129, %p130
      %s133 = sadd.s32 %s132, 1
      %p136 = scmp.eq.s32.totalorder %s14, 1
      %p137 = scmp.ne.s32.totalorder %s132, %s134
      %p138 = scmp.eq.s32.totalorder %s14, 0
      %p139 = por %p137, %p138
      %p140 = scmp.ne.s32.totalorder %s132, %s134
      %p141 = scmp.eq.s32.totalorder %s19, 1
      %p142 = por %p140, %p141
      %p143 = scmp.ne.s32.totalorder %s134, %s135
      %p144 = scmp.eq.s32.totalorder %s19, 0
      %p145 = por %p143, %p144
      %p146 = scmp.ne.s32.totalorder %s134, %s135
      %p147 = scmp.eq.s32.totalorder %s20, 1
      %p148 = por %p146, %p147
      %p150 = scmp.ne.s32.totalorder %s135, %s149
      %p151 = scmp.eq.s32.totalorder %s20, 0
      %p152 = por %p150, %p151
      %s154 = sadd.s32 %s153, 1
      %p157 = scmp.eq.s32.totalorder %s14, 1
      %p158 = scmp.ne.s32.totalorder %s153, %s155
      %p159 = scmp.eq.s32.totalorder %s14, 0
      %p160 = por %p158, %p159
      %p161 = scmp.ne.s32.totalorder %s153, %s155
      %p162 = scmp.eq.s32.totalorder %s19, 1
      %p163 = por %p161, %p162
      %p164 = scmp.ne.s32.totalorder %s155, %s156
      %p165 = scmp.eq.s32.totalorder %s19, 0
      %p166 = por %p164, %p165
      %p167 = scmp.ne.s32.totalorder %s155, %s156
      %p168 = scmp.eq.s32.totalorder %s20, 1
      %p169 = por %p167, %p168
      %p171 = scmp.ne.s32.totalorder %s156, %s170
      %p172 = scmp.eq.s32.totalorder %s20, 0
      %p173 = por %p171, %p172
      %s174 = ssub.s32 %s14, %s21
      %p175 = scmp.eq.s32.totalorder %s174, 0
      %s177 = sadd.s32 %s176, 1
      %s178 = scalar_select %p175, %s176, %s177
      %p181 = pneg %p175
      %p182 = scmp.eq.s32.totalorder %s14, 1
      %p183 = por %p181, %p182
      %p184 = scmp.ne.s32.totalorder %s176, %s179
      %p185 = scmp.eq.s32.totalorder %s14, 0
      %p186 = por %p184, %p185
      %p187 = scmp.ne.s32.totalorder %s176, %s179
      %p188 = scmp.eq.s32.totalorder %s19, 1
      %p189 = por %p187, %p188
      %p190 = scmp.ne.s32.totalorder %s179, %s180
      %p191 = scmp.eq.s32.totalorder %s19, 0
      %p192 = por %p190, %p191
      %p193 = scmp.ne.s32.totalorder %s179, %s180
      %p194 = scmp.eq.s32.totalorder %s20, 1
      %p195 = por %p193, %p194
      %p197 = scmp.ne.s32.totalorder %s180, %s196
      %p198 = scmp.eq.s32.totalorder %s20, 0
      %p199 = por %p197, %p198
      %p200 = scmp.le.s32.totalorder 1, %s14
      %p201 = scmp.lt.s32.totalorder %s14, 3
      %p202 = pnand %p200, %p201
      %p203 = pneg %p202
      // Predicated region
      $region9: #{tpu_custom_call.1} parent=5 // pred_check
        _
      $region10: #{tpu_custom_call.1} parent=5 // pred_check_branch
        %205 = sbr.rel (%p202) target = $region12
      $region11: #{tpu_custom_call.1} parent=5 // pred_region
        %s206 = ssub.s32 %s14, 1
        // Predicated region
        $region13: #{tpu_custom_call.1} parent=11 // pred_check
          %p207 = pneg %p61
        $region14: #{tpu_custom_call.1} parent=11 // pred_check_branch
          %209 = sbr.rel (%p207) target = $region16
        $region15: #{tpu_custom_call.1} parent=11 // pred_region
          _
        $region16: #{tpu_custom_call.1} parent=11 // pred_fallthru
          _
        // Predicated region
        $region17: #{tpu_custom_call.1} parent=11 // pred_check
          %p210 = pneg %p82
        $region18: #{tpu_custom_call.1} parent=11 // pred_check_branch
          %212 = sbr.rel (%p210) target = $region20
        $region19: #{tpu_custom_call.1} parent=11 // pred_region
          _
        $region20: #{tpu_custom_call.1} parent=11 // pred_fallthru
          _
        // Predicated region
        $region21: #{tpu_custom_call.1} parent=11 // pred_check
          %p213 = pneg %p103
        $region22: #{tpu_custom_call.1} parent=11 // pred_check_branch
          %215 = sbr.rel (%p213) target = $region24
        $region23: #{tpu_custom_call.1} parent=11 // pred_region
          %s217 = ssub.s32 3072, 3072
          %218 = vsyncadd [#allocation3], %s217
          %s219 = sshll.u32 [#allocation2], 4
          %s220 = int_to_ptr.vmem [resolvable:$true] %s219
          %225 = dma.hbm_to_vmem [thread:$0]  %s3, 3072, %s220, [#allocation3], 64, 64, 4
        $region24: #{tpu_custom_call.1} parent=11 // pred_fallthru
          _
        // Predicated region
        $region25: #{tpu_custom_call.1} parent=11 // pred_check
          %p226 = pneg %p124
        $region26: #{tpu_custom_call.1} parent=11 // pred_check_branch
          %228 = sbr.rel (%p226) target = $region28
        $region27: #{tpu_custom_call.1} parent=11 // pred_region
          _
        $region28: #{tpu_custom_call.1} parent=11 // pred_fallthru
          _
        // Predicated region
        $region29: #{tpu_custom_call.1} parent=11 // pred_check
          %p229 = pneg %p145
        $region30: #{tpu_custom_call.1} parent=11 // pred_check_branch
          %231 = sbr.rel (%p229) target = $region32
        $region31: #{tpu_custom_call.1} parent=11 // pred_region
          _
        $region32: #{tpu_custom_call.1} parent=11 // pred_fallthru
          _
        // Predicated region
        $region33: #{tpu_custom_call.1} parent=11 // pred_check
          %p232 = pneg %p166
        $region34: #{tpu_custom_call.1} parent=11 // pred_check_branch
          %234 = sbr.rel (%p232) target = $region36
        $region35: #{tpu_custom_call.1} parent=11 // pred_region
          _
        $region36: #{tpu_custom_call.1} parent=11 // pred_fallthru
          _
      $region12: #{tpu_custom_call.1} parent=5 // pred_fallthru
        _
      %p235 = scmp.lt.s32.totalorder %s14, 2
      // Predicated region
      $region37: #{tpu_custom_call.1} parent=5 // pred_check
        %p236 = pneg %p235
      $region38: #{tpu_custom_call.1} parent=5 // pred_check_branch
        %238 = sbr.rel (%p236) target = $region40
      $region39: #{tpu_custom_call.1} parent=5 // pred_region
        // Predicated region
        $region41: #{tpu_custom_call.1} parent=39 // pred_check
          %p239 = pneg %p34
        $region42: #{tpu_custom_call.1} parent=39 // pred_check_branch
          %241 = sbr.rel (%p239) target = $region44
        $region43: #{tpu_custom_call.1} parent=39 // pred_region
          %s242 = smul.u32 4, %s14
          %p243 = scmp.lt.s32.totalorder %s242, 7
          %s244 = scalar_select %p243, %s242, 7
          %s245 = smul.addr %s244, 4
          %s246 = scalar_lea.vmem %s0, %s245
          %s247 = smul.u32 4, %s14
        $region44: #{tpu_custom_call.1} parent=39 // pred_fallthru
          _
      $region40: #{tpu_custom_call.1} parent=5 // pred_fallthru
        _
      %p248 = scmp.le.s32.totalorder 1, %s14
      %p249 = scmp.lt.s32.totalorder %s14, 3
      %p250 = pnand %p248, %p249
      %p251 = pneg %p250
      // Predicated region
      $region45: #{tpu_custom_call.1} parent=5 // pred_check
        _
      $region46: #{tpu_custom_call.1} parent=5 // pred_check_branch
        %253 = sbr.rel (%p250) target = $region48
      $region47: #{tpu_custom_call.1} parent=5 // pred_region
        %s254 = ssub.s32 %s14, 1
        // Predicated region
        $region49: #{tpu_custom_call.1} parent=47 // pred_check
          %p255 = pneg %p103
        $region50: #{tpu_custom_call.1} parent=47 // pred_check_branch
          %257 = sbr.rel (%p255) target = $region52
        $region51: #{tpu_custom_call.1} parent=47 // pred_region
          %258 = dma.done [#allocation3], 3072
        $region52: #{tpu_custom_call.1} parent=47 // pred_fallthru
          _
        %s259 = smul.u32 4, %s19
        %p260 = scmp.lt.s32.totalorder %s259, 7
        %s261 = scalar_select %p260, %s259, 7
        %s262 = smul.addr %s261, 4
        %s263 = scalar_lea.vmem %s0, %s262
        %p264 = pneg %p40
        %p265 = pneg %p37
        %p266 = pneg %p61
        %p267 = pneg %p58
        %p268 = pneg %p82
        %p269 = pneg %p79
        %p270 = pneg %p103
        %p271 = pneg %p100
        %p272 = pneg %p124
        %p273 = pneg %p121
        %p274 = pneg %p145
        %p275 = pneg %p142
        %p276 = pneg %p166
        %p277 = pneg %p163
        %p278 = pneg %p192
        %p279 = pneg %p189
        %s280 = smul.u32 4, %s19
        %p281 = scmp.lt.s32.totalorder %s280, 7
        %s282 = scalar_select %p281, %s280, 7
        %s283 = smul.addr %s282, 4
        %s284 = scalar_lea.vmem %s7, %s283
        %s285 = smul.u32 4, %s19
        %p286 = scmp.lt.s32.totalorder %s285, 7
        %s287 = scalar_select %p286, %s285, 7
        %s288 = smul.addr %s287, 4
        %s289 = scalar_lea.vmem %s0, %s288
        %s290 = smul.u32 4, %s19
        %s291 = smul.u32 4, %s19
        %p292 = scmp.lt.s32.totalorder %s291, 7
        %s293 = scalar_select %p292, %s291, 7
        %s294 = smul.addr %s293, 4
        %s295 = scalar_lea.vmem %s7, %s294
        %s296 = smul.u32 4, %s19
        %v302 = vld [vmem:[%s289] sm:$0xf]
        %v303 = vld [vmem:[%s289 + $0x4] sm:$0xf]
        %v304 = vld [vmem:[%s289 + $0x8] sm:$0xf]
        %v305 = vld [vmem:[%s289 + $0xc] sm:$0xf]
        %v306 = vld [vmem:[%s1] sm:$0xf]
        %v307 = vld [vmem:[%s1 + $0x4] sm:$0xf]
        %v308 = vld [vmem:[%s1 + $0x8] sm:$0xf]
        %v309 = vld [vmem:[%s1 + $0xc] sm:$0xf]
        %v314 = vunpack.c.l.b16 %v302
        %v315 = vunpack.c.l.b16 %v303
        %v316 = vunpack.c.l.b16 %v304
        %v317 = vunpack.c.l.b16 %v305
        %v318 = vpack.c.b16 %v315, %v314
        %v319 = vpack.c.b16 %v317, %v316
        %v324 = vunpack.c.l.b16 %v306
        %v325 = vunpack.c.l.b16 %v307
        %v326 = vunpack.c.l.b16 %v308
        %v327 = vunpack.c.l.b16 %v309
        %v328 = vpack.c.b16 %v325, %v324
        %v329 = vpack.c.b16 %v327, %v326
        %vm332 = vcmask 261120
        %v334 = vsel %vm332, %v318, 0
        %v337 = vsel %vm332, %v319, 0
        %339 = vmatprep.subr.bf16.mxu0 0
        %340 = vmatpush1.bf16.msra.mxu0 0
        %341 = vmatprep.subr.bf16.mxu0 0
        %342 = vmatpush1.bf16.msra.mxu0 0
        %343 = vmatprep.subr.bf16.mxu0 0
        %344 = vmatpush1.bf16.msra.mxu0 0
        %345 = vmatprep.subr.bf16.mxu0 0
        %346 = vmatpush1.bf16.msra.mxu0 0
        %347 = vmatprep.subr.bf16.mxu0 0
        %348 = vmatpush1.bf16.msra.mxu0 0
        %349 = vmatprep.subr.bf16.mxu0 0
        %350 = vmatpush1.bf16.msra.mxu0 0
        %351 = vmatprep.subr.bf16.mxu0 0
        %352 = vmatpush1.bf16.msra.mxu0 %v329
        %353 = vmatprep.subr.bf16.mxu0 0
        %354 = vmatpush1.bf16.msra.mxu0 %v328
        %355 = vmatprep.subr.bf16.mxu0 0
        %356 = vmatpush2.bf16.msra.mxu0 0
        %357 = vmatprep.subr.bf16.mxu0 0
        %358 = vmatpush2.bf16.msra.mxu0 0
        %359 = vmatprep.subr.bf16.mxu0 0
        %360 = vmatpush2.bf16.msra.mxu0 0
        %361 = vmatprep.subr.bf16.mxu0 0
        %362 = vmatpush2.bf16.msra.mxu0 0
        %363 = vmatprep.subr.bf16.mxu0 0
        %364 = vmatpush2.bf16.msra.mxu0 0
        %365 = vmatprep.subr.bf16.mxu0 0
        %366 = vmatpush2.bf16.msra.mxu0 0
        %367 = vmatprep.subr.bf16.mxu0 0
        %368 = vmatpush2.bf16.msra.mxu0 0
        %369 = vmatprep.subr.bf16.mxu0 0
        %370 = vmatpush2.bf16.msra.mxu0 0
        %371 = vmatprep.mubr.bf16.mxu0 0
        %372 = vmatmul.mubr.bf16.gmra.mxu0 %v334
        %v373 = vpop.f32.mrf.mxu0
        %v374 = vadd.f32 0.0, %v373
        %v375 = vpop.f32.mrf.mxu0
        %v376 = vpop.f32.mrf.mxu0
        %v377 = vadd.f32 0.0, %v376
        %v378 = vpop.f32.mrf.mxu0
        %379 = vmatprep.mubr.bf16.mxu0 0
        %380 = vmatmul.mubr.bf16.gmra.mxu0 %v337
        %v381 = vpop.f32.mrf.mxu0
        %v382 = vadd.f32 0.0, %v381
        %v383 = vpop.f32.mrf.mxu0
        %v384 = vpop.f32.mrf.mxu0
        %v385 = vadd.f32 0.0, %v384
        %v386 = vpop.f32.mrf.mxu0
        %387 = vdwg.mxu0
        %v388 = vpack.c.bf16 %v377, %v374
        %v389 = vpack.c.bf16 %v385, %v382
        %v390 = vld [vmem:[%s2] sm:$0x1]
        %v392 = vpack.i.b16 %v390, %v390
        %v394 = vlaneseq
        %v395 = vshrl.u32 %v394, 7
        %v396 = vsub.s32 0, %v395
        %v397 = vrot.slane %v392, %v396
        %v398 = vadd.bf16 %v388, %v397
        %v399 = vadd.bf16 %v389, %v397
        %v400 = vmul.bf16 %v398, 1056980736
        %v401 = vmul.bf16 %v399, 1056980736
        %v402 = vmul.bf16 %v398, 1027030327
        %v403 = vmul.bf16 %v399, 1027030327
        %v404 = vmul.bf16 %v402, %v398
        %v405 = vmul.bf16 %v403, %v399
        %v406 = vmul.bf16 %v404, %v398
        %v407 = vmul.bf16 %v405, %v399
        %v408 = vadd.bf16 %v398, %v406
        %v409 = vadd.bf16 %v399, %v407
        %v410 = vmul.bf16 %v408, 1061961548
        %v411 = vmul.bf16 %v409, 1061961548
        %v412 = vtanh.bf16.pop %v410
        %v413 = vtanh.bf16.pop %v411
        %v414 = vadd.bf16 %v412, 1065369472
        %v415 = vadd.bf16 %v413, 1065369472
        %v416 = vmul.bf16 %v400, %v414
        %v417 = vmul.bf16 %v401, %v415
        %v418 = vld [vmem:[#allocation2] sm:$0xf]
        %v419 = vld [vmem:[#allocation2 + $0x4] sm:$0xf]
        %v420 = vld [vmem:[#allocation2 + $0x8] sm:$0xf]
        %v421 = vld [vmem:[#allocation2 + $0xc] sm:$0xf]
        %v422 = vld [vmem:[#allocation2 + $0x10] sm:$0xf]
        %v423 = vld [vmem:[#allocation2 + $0x14] sm:$0xf]
        %v424 = vld [vmem:[#allocation2 + $0x18] sm:$0xf]
        %v425 = vld [vmem:[#allocation2 + $0x1c] sm:$0xf]
        %v426 = vld [vmem:[#allocation2 + $0x20] sm:$0xf]
        %v427 = vld [vmem:[#allocation2 + $0x24] sm:$0xf]
        %v428 = vld [vmem:[#allocation2 + $0x28] sm:$0xf]
        %v429 = vld [vmem:[#allocation2 + $0x2c] sm:$0xf]
        %v430 = vld [vmem:[#allocation2 + $0x30] sm:$0xf]
        %v431 = vld [vmem:[#allocation2 + $0x34] sm:$0xf]
        %v432 = vld [vmem:[#allocation2 + $0x38] sm:$0xf]
        %v433 = vld [vmem:[#allocation2 + $0x3c] sm:$0xf]
        %v450 = vunpack.c.l.b16 %v418
        %v451 = vunpack.c.l.b16 %v419
        %v452 = vunpack.c.l.b16 %v420
        %v453 = vunpack.c.l.b16 %v421
        %v454 = vunpack.c.l.b16 %v422
        %v455 = vunpack.c.l.b16 %v423
        %v456 = vunpack.c.l.b16 %v424
        %v457 = vunpack.c.l.b16 %v425
        %v458 = vunpack.c.l.b16 %v426
        %v459 = vunpack.c.l.b16 %v427
        %v460 = vunpack.c.l.b16 %v428
        %v461 = vunpack.c.l.b16 %v429
        %v462 = vunpack.c.l.b16 %v430
        %v463 = vunpack.c.l.b16 %v431
        %v464 = vunpack.c.l.b16 %v432
        %v465 = vunpack.c.l.b16 %v433
        %v466 = vpack.c.b16 %v451, %v450
        %v467 = vpack.c.b16 %v453, %v452
        %v468 = vpack.c.b16 %v455, %v454
        %v469 = vpack.c.b16 %v457, %v456
        %v470 = vpack.c.b16 %v459, %v458
        %v471 = vpack.c.b16 %v461, %v460
        %v472 = vpack.c.b16 %v463, %v462
        %v473 = vpack.c.b16 %v465, %v464
        %482 = vmatprep.subr.bf16.mxu0 0
        %483 = vmatpush1.bf16.msra.mxu0 %v473
        %484 = vmatprep.subr.bf16.mxu0 0
        %485 = vmatpush1.bf16.msra.mxu0 %v472
        %486 = vmatprep.subr.bf16.mxu0 0
        %487 = vmatpush1.bf16.msra.mxu0 %v471
        %488 = vmatprep.subr.bf16.mxu0 0
        %489 = vmatpush1.bf16.msra.mxu0 %v470
        %490 = vmatprep.subr.bf16.mxu0 0
        %491 = vmatpush1.bf16.msra.mxu0 %v469
        %492 = vmatprep.subr.bf16.mxu0 0
        %493 = vmatpush1.bf16.msra.mxu0 %v468
        %494 = vmatprep.subr.bf16.mxu0 0
        %495 = vmatpush1.bf16.msra.mxu0 %v467
        %496 = vmatprep.subr.bf16.mxu0 0
        %497 = vmatpush1.bf16.msra.mxu0 %v466
        %498 = vmatprep.subr.bf16.mxu0 0
        %499 = vmatpush2.bf16.msra.mxu0 0
        %500 = vmatprep.subr.bf16.mxu0 0
        %501 = vmatpush2.bf16.msra.mxu0 0
        %502 = vmatprep.subr.bf16.mxu0 0
        %503 = vmatpush2.bf16.msra.mxu0 0
        %504 = vmatprep.subr.bf16.mxu0 0
        %505 = vmatpush2.bf16.msra.mxu0 0
        %506 = vmatprep.subr.bf16.mxu0 0
        %507 = vmatpush2.bf16.msra.mxu0 0
        %508 = vmatprep.subr.bf16.mxu0 0
        %509 = vmatpush2.bf16.msra.mxu0 0
        %510 = vmatprep.subr.bf16.mxu0 0
        %511 = vmatpush2.bf16.msra.mxu0 0
        %512 = vmatprep.subr.bf16.mxu0 0
        %513 = vmatpush2.bf16.msra.mxu0 0
        %514 = vmatprep.mubr.bf16.mxu0 0
        %515 = vmatmul.mubr.bf16.gmra.mxu0 %v416
        %v516 = vpop.f32.mrf.mxu0
        %v517 = vadd.f32 0.0, %v516
        %v518 = vpop.f32.mrf.mxu0
        %v519 = vpop.f32.mrf.mxu0
        %v520 = vadd.f32 0.0, %v519
        %v521 = vpop.f32.mrf.mxu0
        %522 = vmatprep.mubr.bf16.mxu0 0
        %523 = vmatmul.mubr.bf16.gmra.mxu0 %v417
        %v524 = vpop.f32.mrf.mxu0
        %v525 = vadd.f32 0.0, %v524
        %v526 = vpop.f32.mrf.mxu0
        %v527 = vpop.f32.mrf.mxu0
        %v528 = vadd.f32 0.0, %v527
        %v529 = vpop.f32.mrf.mxu0
        %530 = vdwg.mxu0
        %v531 = vpack.c.bf16 %v520, %v517
        %v532 = vpack.c.bf16 %v528, %v525
        %v533 = vld [vmem:[%s4] sm:$0x1]
        %v535 = vpack.i.b16 %v533, %v533
        %v537 = vlaneseq
        %v538 = vshrl.u32 %v537, 7
        %v539 = vsub.s32 0, %v538
        %v540 = vrot.slane %v535, %v539
        %v541 = vadd.bf16 %v531, %v540
        %v542 = vadd.bf16 %v532, %v540
        %v543 = vmul.bf16 %v541, 1056980736
        %v544 = vmul.bf16 %v542, 1056980736
        %v545 = vmul.bf16 %v541, 1027030327
        %v546 = vmul.bf16 %v542, 1027030327
        %v547 = vmul.bf16 %v545, %v541
        %v548 = vmul.bf16 %v546, %v542
        %v549 = vmul.bf16 %v547, %v541
        %v550 = vmul.bf16 %v548, %v542
        %v551 = vadd.bf16 %v541, %v549
        %v552 = vadd.bf16 %v542, %v550
        %v553 = vmul.bf16 %v551, 1061961548
        %v554 = vmul.bf16 %v552, 1061961548
        %v555 = vtanh.bf16.pop %v553
        %v556 = vtanh.bf16.pop %v554
        %v557 = vadd.bf16 %v555, 1065369472
        %v558 = vadd.bf16 %v556, 1065369472
        %v559 = vmul.bf16 %v543, %v557
        %v560 = vmul.bf16 %v544, %v558
        %v561 = vadd.bf16 %v559, %v416
        %v562 = vadd.bf16 %v560, %v417
        %s563 = scalar_lea.vmem [#allocation2], 64
        %v564 = vld [vmem:[%s563] sm:$0xf]
        %v565 = vld [vmem:[%s563 + $0x4] sm:$0xf]
        %v566 = vld [vmem:[%s563 + $0x8] sm:$0xf]
        %v567 = vld [vmem:[%s563 + $0xc] sm:$0xf]
        %v568 = vld [vmem:[%s563 + $0x10] sm:$0xf]
        %v569 = vld [vmem:[%s563 + $0x14] sm:$0xf]
        %v570 = vld [vmem:[%s563 + $0x18] sm:$0xf]
        %v571 = vld [vmem:[%s563 + $0x1c] sm:$0xf]
        %v572 = vld [vmem:[%s563 + $0x20] sm:$0xf]
        %v573 = vld [vmem:[%s563 + $0x24] sm:$0xf]
        %v574 = vld [vmem:[%s563 + $0x28] sm:$0xf]
        %v575 = vld [vmem:[%s563 + $0x2c] sm:$0xf]
        %v576 = vld [vmem:[%s563 + $0x30] sm:$0xf]
        %v577 = vld [vmem:[%s563 + $0x34] sm:$0xf]
        %v578 = vld [vmem:[%s563 + $0x38] sm:$0xf]
        %v579 = vld [vmem:[%s563 + $0x3c] sm:$0xf]
        %v596 = vunpack.c.l.b16 %v564
        %v597 = vunpack.c.l.b16 %v565
        %v598 = vunpack.c.l.b16 %v566
        %v599 = vunpack.c.l.b16 %v567
        %v600 = vunpack.c.l.b16 %v568
        %v601 = vunpack.c.l.b16 %v569
        %v602 = vunpack.c.l.b16 %v570
        %v603 = vunpack.c.l.b16 %v571
        %v604 = vunpack.c.l.b16 %v572
        %v605 = vunpack.c.l.b16 %v573
        %v606 = vunpack.c.l.b16 %v574
        %v607 = vunpack.c.l.b16 %v575
        %v608 = vunpack.c.l.b16 %v576
        %v609 = vunpack.c.l.b16 %v577
        %v610 = vunpack.c.l.b16 %v578
        %v611 = vunpack.c.l.b16 %v579
        %v612 = vpack.c.b16 %v597, %v596
        %v613 = vpack.c.b16 %v599, %v598
        %v614 = vpack.c.b16 %v601, %v600
        %v615 = vpack.c.b16 %v603, %v602
        %v616 = vpack.c.b16 %v605, %v604
        %v617 = vpack.c.b16 %v607, %v606
        %v618 = vpack.c.b16 %v609, %v608
        %v619 = vpack.c.b16 %v611, %v610
        %628 = vmatprep.subr.bf16.mxu0 0
        %629 = vmatpush1.bf16.msra.mxu0 %v619
        %630 = vmatprep.subr.bf16.mxu0 0
        %631 = vmatpush1.bf16.msra.mxu0 %v618
        %632 = vmatprep.subr.bf16.mxu0 0
        %633 = vmatpush1.bf16.msra.mxu0 %v617
        %634 = vmatprep.subr.bf16.mxu0 0
        %635 = vmatpush1.bf16.msra.mxu0 %v616
        %636 = vmatprep.subr.bf16.mxu0 0
        %637 = vmatpush1.bf16.msra.mxu0 %v615
        %638 = vmatprep.subr.bf16.mxu0 0
        %639 = vmatpush1.bf16.msra.mxu0 %v614
        %640 = vmatprep.subr.bf16.mxu0 0
        %641 = vmatpush1.bf16.msra.mxu0 %v613
        %642 = vmatprep.subr.bf16.mxu0 0
        %643 = vmatpush1.bf16.msra.mxu0 %v612
        %644 = vmatprep.subr.bf16.mxu0 0
        %645 = vmatpush2.bf16.msra.mxu0 0
        %646 = vmatprep.subr.bf16.mxu0 0
        %647 = vmatpush2.bf16.msra.mxu0 0
        %648 = vmatprep.subr.bf16.mxu0 0
        %649 = vmatpush2.bf16.msra.mxu0 0
        %650 = vmatprep.subr.bf16.mxu0 0
        %651 = vmatpush2.bf16.msra.mxu0 0
        %652 = vmatprep.subr.bf16.mxu0 0
        %653 = vmatpush2.bf16.msra.mxu0 0
        %654 = vmatprep.subr.bf16.mxu0 0
        %655 = vmatpush2.bf16.msra.mxu0 0
        %656 = vmatprep.subr.bf16.mxu0 0
        %657 = vmatpush2.bf16.msra.mxu0 0
        %658 = vmatprep.subr.bf16.mxu0 0
        %659 = vmatpush2.bf16.msra.mxu0 0
        %660 = vmatprep.mubr.bf16.mxu0 0
        %661 = vmatmul.mubr.bf16.gmra.mxu0 %v561
        %v662 = vpop.f32.mrf.mxu0
        %v663 = vadd.f32 0.0, %v662
        %v664 = vpop.f32.mrf.mxu0
        %v665 = vpop.f32.mrf.mxu0
        %v666 = vadd.f32 0.0, %v665
        %v667 = vpop.f32.mrf.mxu0
        %668 = vmatprep.mubr.bf16.mxu0 0
        %669 = vmatmul.mubr.bf16.gmra.mxu0 %v562
        %v670 = vpop.f32.mrf.mxu0
        %v671 = vadd.f32 0.0, %v670
        %v672 = vpop.f32.mrf.mxu0
        %v673 = vpop.f32.mrf.mxu0
        %v674 = vadd.f32 0.0, %v673
        %v675 = vpop.f32.mrf.mxu0
        %676 = vdwg.mxu0
        %v677 = vpack.c.bf16 %v666, %v663
        %v678 = vpack.c.bf16 %v674, %v671
        %s679 = scalar_lea.vmem %s4, 1
        %v680 = vld [vmem:[%s679] sm:$0x1]
        %v682 = vpack.i.b16 %v680, %v680
        %v684 = vlaneseq
        %v685 = vshrl.u32 %v684, 7
        %v686 = vsub.s32 0, %v685
        %v687 = vrot.slane %v682, %v686
        %v688 = vadd.bf16 %v677, %v687
        %v689 = vadd.bf16 %v678, %v687
        %v690 = vmul.bf16 %v688, 1056980736
        %v691 = vmul.bf16 %v689, 1056980736
        %v692 = vmul.bf16 %v688, 1027030327
        %v693 = vmul.bf16 %v689, 1027030327
        %v694 = vmul.bf16 %v692, %v688
        %v695 = vmul.bf16 %v693, %v689
        %v696 = vmul.bf16 %v694, %v688
        %v697 = vmul.bf16 %v695, %v689
        %v698 = vadd.bf16 %v688, %v696
        %v699 = vadd.bf16 %v689, %v697
        %v700 = vmul.bf16 %v698, 1061961548
        %v701 = vmul.bf16 %v699, 1061961548
        %v702 = vtanh.bf16.pop %v700
        %v703 = vtanh.bf16.pop %v701
        %v704 = vadd.bf16 %v702, 1065369472
        %v705 = vadd.bf16 %v703, 1065369472
        %v706 = vmul.bf16 %v690, %v704
        %v707 = vmul.bf16 %v691, %v705
        %v708 = vadd.bf16 %v706, %v561
        %v709 = vadd.bf16 %v707, %v562
        %s710 = scalar_lea.vmem [#allocation2], 128
        %v711 = vld [vmem:[%s710] sm:$0xf]
        %v712 = vld [vmem:[%s710 + $0x4] sm:$0xf]
        %v713 = vld [vmem:[%s710 + $0x8] sm:$0xf]
        %v714 = vld [vmem:[%s710 + $0xc] sm:$0xf]
        %v715 = vld [vmem:[%s710 + $0x10] sm:$0xf]
        %v716 = vld [vmem:[%s710 + $0x14] sm:$0xf]
        %v717 = vld [vmem:[%s710 + $0x18] sm:$0xf]
        %v718 = vld [vmem:[%s710 + $0x1c] sm:$0xf]
        %v719 = vld [vmem:[%s710 + $0x20] sm:$0xf]
        %v720 = vld [vmem:[%s710 + $0x24] sm:$0xf]
        %v721 = vld [vmem:[%s710 + $0x28] sm:$0xf]
        %v722 = vld [vmem:[%s710 + $0x2c] sm:$0xf]
        %v723 = vld [vmem:[%s710 + $0x30] sm:$0xf]
        %v724 = vld [vmem:[%s710 + $0x34] sm:$0xf]
        %v725 = vld [vmem:[%s710 + $0x38] sm:$0xf]
        %v726 = vld [vmem:[%s710 + $0x3c] sm:$0xf]
        %v743 = vunpack.c.l.b16 %v711
        %v744 = vunpack.c.l.b16 %v712
        %v745 = vunpack.c.l.b16 %v713
        %v746 = vunpack.c.l.b16 %v714
        %v747 = vunpack.c.l.b16 %v715
        %v748 = vunpack.c.l.b16 %v716
        %v749 = vunpack.c.l.b16 %v717
        %v750 = vunpack.c.l.b16 %v718
        %v751 = vunpack.c.l.b16 %v719
        %v752 = vunpack.c.l.b16 %v720
        %v753 = vunpack.c.l.b16 %v721
        %v754 = vunpack.c.l.b16 %v722
        %v755 = vunpack.c.l.b16 %v723
        %v756 = vunpack.c.l.b16 %v724
        %v757 = vunpack.c.l.b16 %v725
        %v758 = vunpack.c.l.b16 %v726
        %v759 = vpack.c.b16 %v744, %v743
        %v760 = vpack.c.b16 %v746, %v745
        %v761 = vpack.c.b16 %v748, %v747
        %v762 = vpack.c.b16 %v750, %v749
        %v763 = vpack.c.b16 %v752, %v751
        %v764 = vpack.c.b16 %v754, %v753
        %v765 = vpack.c.b16 %v756, %v755
        %v766 = vpack.c.b16 %v758, %v757
        %775 = vmatprep.subr.bf16.mxu0 0
        %776 = vmatpush1.bf16.msra.mxu0 %v766
        %777 = vmatprep.subr.bf16.mxu0 0
        %778 = vmatpush1.bf16.msra.mxu0 %v765
        %779 = vmatprep.subr.bf16.mxu0 0
        %780 = vmatpush1.bf16.msra.mxu0 %v764
        %781 = vmatprep.subr.bf16.mxu0 0
        %782 = vmatpush1.bf16.msra.mxu0 %v763
        %783 = vmatprep.subr.bf16.mxu0 0
        %784 = vmatpush1.bf16.msra.mxu0 %v762
        %785 = vmatprep.subr.bf16.mxu0 0
        %786 = vmatpush1.bf16.msra.mxu0 %v761
        %787 = vmatprep.subr.bf16.mxu0 0
        %788 = vmatpush1.bf16.msra.mxu0 %v760
        %789 = vmatprep.subr.bf16.mxu0 0
        %790 = vmatpush1.bf16.msra.mxu0 %v759
        %791 = vmatprep.subr.bf16.mxu0 0
        %792 = vmatpush2.bf16.msra.mxu0 0
        %793 = vmatprep.subr.bf16.mxu0 0
        %794 = vmatpush2.bf16.msra.mxu0 0
        %795 = vmatprep.subr.bf16.mxu0 0
        %796 = vmatpush2.bf16.msra.mxu0 0
        %797 = vmatprep.subr.bf16.mxu0 0
        %798 = vmatpush2.bf16.msra.mxu0 0
        %799 = vmatprep.subr.bf16.mxu0 0
        %800 = vmatpush2.bf16.msra.mxu0 0
        %801 = vmatprep.subr.bf16.mxu0 0
        %802 = vmatpush2.bf16.msra.mxu0 0
        %803 = vmatprep.subr.bf16.mxu0 0
        %804 = vmatpush2.bf16.msra.mxu0 0
        %805 = vmatprep.subr.bf16.mxu0 0
        %806 = vmatpush2.bf16.msra.mxu0 0
        %807 = vmatprep.mubr.bf16.mxu0 0
        %808 = vmatmul.mubr.bf16.gmra.mxu0 %v708
        %v809 = vpop.f32.mrf.mxu0
        %v810 = vadd.f32 0.0, %v809
        %v811 = vpop.f32.mrf.mxu0
        %v812 = vpop.f32.mrf.mxu0
        %v813 = vadd.f32 0.0, %v812
        %v814 = vpop.f32.mrf.mxu0
        %815 = vmatprep.mubr.bf16.mxu0 0
        %816 = vmatmul.mubr.bf16.gmra.mxu0 %v709
        %v817 = vpop.f32.mrf.mxu0
        %v818 = vadd.f32 0.0, %v817
        %v819 = vpop.f32.mrf.mxu0
        %v820 = vpop.f32.mrf.mxu0
        %v821 = vadd.f32 0.0, %v820
        %v822 = vpop.f32.mrf.mxu0
        %823 = vdwg.mxu0
        %v824 = vpack.c.bf16 %v813, %v810
        %v825 = vpack.c.bf16 %v821, %v818
        %s826 = scalar_lea.vmem %s4, 2
        %v827 = vld [vmem:[%s826] sm:$0x1]
        %v829 = vpack.i.b16 %v827, %v827
        %v831 = vlaneseq
        %v832 = vshrl.u32 %v831, 7
        %v833 = vsub.s32 0, %v832
        %v834 = vrot.slane %v829, %v833
        %v835 = vadd.bf16 %v824, %v834
        %v836 = vadd.bf16 %v825, %v834
        %v837 = vmul.bf16 %v835, 1056980736
        %v838 = vmul.bf16 %v836, 1056980736
        %v839 = vmul.bf16 %v835, 1027030327
        %v840 = vmul.bf16 %v836, 1027030327
        %v841 = vmul.bf16 %v839, %v835
        %v842 = vmul.bf16 %v840, %v836
        %v843 = vmul.bf16 %v841, %v835
        %v844 = vmul.bf16 %v842, %v836
        %v845 = vadd.bf16 %v835, %v843
        %v846 = vadd.bf16 %v836, %v844
        %v847 = vmul.bf16 %v845, 1061961548
        %v848 = vmul.bf16 %v846, 1061961548
        %v849 = vtanh.bf16.pop %v847
        %v850 = vtanh.bf16.pop %v848
        %v851 = vadd.bf16 %v849, 1065369472
        %v852 = vadd.bf16 %v850, 1065369472
        %v853 = vmul.bf16 %v837, %v851
        %v854 = vmul.bf16 %v838, %v852
        %v855 = vadd.bf16 %v853, %v708
        %v856 = vadd.bf16 %v854, %v709
        %v857 = vld [vmem:[%s5] sm:$0xf]
        %v858 = vld [vmem:[%s5 + $0x4] sm:$0xf]
        %v859 = vld [vmem:[%s5 + $0x8] sm:$0xf]
        %v860 = vld [vmem:[%s5 + $0xc] sm:$0xf]
        %v861 = vld [vmem:[%s5 + $0x10] sm:$0xf]
        %v862 = vld [vmem:[%s5 + $0x14] sm:$0xf]
        %v863 = vld [vmem:[%s5 + $0x18] sm:$0xf]
        %v864 = vld [vmem:[%s5 + $0x1c] sm:$0xf]
        %v865 = vld [vmem:[%s5 + $0x20] sm:$0xf]
        %v866 = vld [vmem:[%s5 + $0x24] sm:$0xf]
        %v867 = vld [vmem:[%s5 + $0x28] sm:$0xf]
        %v868 = vld [vmem:[%s5 + $0x2c] sm:$0xf]
        %v869 = vld [vmem:[%s5 + $0x30] sm:$0xf]
        %v870 = vld [vmem:[%s5 + $0x34] sm:$0xf]
        %v871 = vld [vmem:[%s5 + $0x38] sm:$0xf]
        %v872 = vld [vmem:[%s5 + $0x3c] sm:$0xf]
        %v889 = vunpack.c.l.b16 %v857
        %v890 = vunpack.c.l.b16 %v858
        %v891 = vunpack.c.l.b16 %v859
        %v892 = vunpack.c.l.b16 %v860
        %v893 = vunpack.c.l.b16 %v861
        %v894 = vunpack.c.l.b16 %v862
        %v895 = vunpack.c.l.b16 %v863
        %v896 = vunpack.c.l.b16 %v864
        %v897 = vunpack.c.l.b16 %v865
        %v898 = vunpack.c.l.b16 %v866
        %v899 = vunpack.c.l.b16 %v867
        %v900 = vunpack.c.l.b16 %v868
        %v901 = vunpack.c.l.b16 %v869
        %v902 = vunpack.c.l.b16 %v870
        %v903 = vunpack.c.l.b16 %v871
        %v904 = vunpack.c.l.b16 %v872
        %v905 = vpack.c.b16 %v890, %v889
        %v906 = vpack.c.b16 %v892, %v891
        %v907 = vpack.c.b16 %v894, %v893
        %v908 = vpack.c.b16 %v896, %v895
        %v909 = vpack.c.b16 %v898, %v897
        %v910 = vpack.c.b16 %v900, %v899
        %v911 = vpack.c.b16 %v902, %v901
        %v912 = vpack.c.b16 %v904, %v903
        %921 = vmatprep.subr.bf16.mxu0 0
        %922 = vmatpush1.bf16.msra.mxu0 %v912
        %923 = vmatprep.subr.bf16.mxu0 0
        %924 = vmatpush1.bf16.msra.mxu0 %v911
        %925 = vmatprep.subr.bf16.mxu0 0
        %926 = vmatpush1.bf16.msra.mxu0 %v910
        %927 = vmatprep.subr.bf16.mxu0 0
        %928 = vmatpush1.bf16.msra.mxu0 %v909
        %929 = vmatprep.subr.bf16.mxu0 0
        %930 = vmatpush1.bf16.msra.mxu0 %v908
        %931 = vmatprep.subr.bf16.mxu0 0
        %932 = vmatpush1.bf16.msra.mxu0 %v907
        %933 = vmatprep.subr.bf16.mxu0 0
        %934 = vmatpush1.bf16.msra.mxu0 %v906
        %935 = vmatprep.subr.bf16.mxu0 0
        %936 = vmatpush1.bf16.msra.mxu0 %v905
        %937 = vmatprep.subr.bf16.mxu0 0
        %938 = vmatpush2.bf16.msra.mxu0 0
        %939 = vmatprep.subr.bf16.mxu0 0
        %940 = vmatpush2.bf16.msra.mxu0 0
        %941 = vmatprep.subr.bf16.mxu0 0
        %942 = vmatpush2.bf16.msra.mxu0 0
        %943 = vmatprep.subr.bf16.mxu0 0
        %944 = vmatpush2.bf16.msra.mxu0 0
        %945 = vmatprep.subr.bf16.mxu0 0
        %946 = vmatpush2.bf16.msra.mxu0 0
        %947 = vmatprep.subr.bf16.mxu0 0
        %948 = vmatpush2.bf16.msra.mxu0 0
        %949 = vmatprep.subr.bf16.mxu0 0
        %950 = vmatpush2.bf16.msra.mxu0 0
        %951 = vmatprep.subr.bf16.mxu0 0
        %952 = vmatpush2.bf16.msra.mxu0 0
        %953 = vmatprep.mubr.bf16.mxu0 0
        %954 = vmatmul.mubr.bf16.gmra.mxu0 %v855
        %v955 = vpop.f32.mrf.mxu0
        %v956 = vadd.f32 0.0, %v955
        %v957 = vpop.f32.mrf.mxu0
        %v958 = vpop.f32.mrf.mxu0
        %v959 = vadd.f32 0.0, %v958
        %v960 = vpop.f32.mrf.mxu0
        %961 = vmatprep.mubr.bf16.mxu0 0
        %962 = vmatmul.mubr.bf16.gmra.mxu0 %v856
        %v963 = vpop.f32.mrf.mxu0
        %v964 = vadd.f32 0.0, %v963
        %v965 = vpop.f32.mrf.mxu0
        %v966 = vpop.f32.mrf.mxu0
        %v967 = vadd.f32 0.0, %v966
        %v968 = vpop.f32.mrf.mxu0
        %969 = vdwg.mxu0
        %v970 = vpack.c.bf16 %v959, %v956
        %v971 = vpack.c.bf16 %v967, %v964
        %v972 = vld [vmem:[%s6] sm:$0x1]
        %v974 = vpack.i.b16 %v972, %v972
        %v976 = vlaneseq
        %v977 = vshrl.u32 %v976, 7
        %v978 = vsub.s32 0, %v977
        %v979 = vrot.slane %v974, %v978
        %v980 = vadd.bf16 %v970, %v979
        %v981 = vadd.bf16 %v971, %v979
        %v982 = vmul.bf16 %v980, 1056980736
        %v983 = vmul.bf16 %v981, 1056980736
        %v984 = vmul.bf16 %v980, 1027030327
        %v985 = vmul.bf16 %v981, 1027030327
        %v986 = vmul.bf16 %v984, %v980
        %v987 = vmul.bf16 %v985, %v981
        %v988 = vmul.bf16 %v986, %v980
        %v989 = vmul.bf16 %v987, %v981
        %v990 = vadd.bf16 %v980, %v988
        %v991 = vadd.bf16 %v981, %v989
        %v992 = vmul.bf16 %v990, 1061961548
        %v993 = vmul.bf16 %v991, 1061961548
        %v994 = vtanh.bf16.pop %v992
        %v995 = vtanh.bf16.pop %v993
        %v996 = vadd.bf16 %v994, 1065369472
        %v997 = vadd.bf16 %v995, 1065369472
        %v998 = vmul.bf16 %v982, %v996
        %v999 = vmul.bf16 %v983, %v997
        %v1002 = vadd.bf16 %v998, %v318
        %v1003 = vadd.bf16 %v999, %v319
        %v1006 = vunpack.c.l.b16 %v1002
        %v1007 = vunpack.c.h.b16 %v1002
        %v1008 = vunpack.c.l.b16 %v1003
        %v1009 = vunpack.c.h.b16 %v1003
        %v1010 = vpack.c.b16 %v1006, %v1006
        %v1011 = vpack.c.b16 %v1007, %v1007
        %v1012 = vpack.c.b16 %v1008, %v1008
        %v1013 = vpack.c.b16 %v1009, %v1009
        %vm1018 = vcmask 257024
        %1019 = vst.msk [vmem:[%s295] sm:$0xf] %vm1018, %v1010
        %1020 = vst.msk [vmem:[%s295 + $0x4] sm:$0xf] %vm1018, %v1011
        %1021 = vst.msk [vmem:[%s295 + $0x8] sm:$0xf] %vm1018, %v1012
        %1022 = vst.msk [vmem:[%s295 + $0xc] sm:$0xf] %vm1018, %v1013
        %s1023 = smul.u32 4, %s19
        %p1024 = scmp.lt.s32.totalorder %s1023, 7
        %s1025 = scalar_select %p1024, %s1023, 7
        %s1026 = smul.addr %s1025, 4
        %s1027 = scalar_lea.vmem %s7, %s1026
        // Predicated region
        $region53: #{tpu_custom_call.1} parent=47 // pred_check
          %p1028 = pneg %p189
        $region54: #{tpu_custom_call.1} parent=47 // pred_check_branch
          %1030 = sbr.rel (%p1028) target = $region56
        $region55: #{tpu_custom_call.1} parent=47 // pred_region
          %s1031 = smul.u32 4, %s19
        $region56: #{tpu_custom_call.1} parent=47 // pred_fallthru
          _
      $region48: #{tpu_custom_call.1} parent=5 // pred_fallthru
        _
      %p1032 = scmp.le.s32.totalorder 2, %s14
      // Predicated region
      $region57: #{tpu_custom_call.1} parent=5 // pred_check
        %p1033 = pneg %p1032
      $region58: #{tpu_custom_call.1} parent=5 // pred_check_branch
        %1035 = sbr.rel (%p1033) target = $region60
      $region59: #{tpu_custom_call.1} parent=5 // pred_region
        %s1036 = ssub.s32 %s14, 2
        // Predicated region
        $region61: #{tpu_custom_call.1} parent=59 // pred_check
          %p1037 = pneg %p195
        $region62: #{tpu_custom_call.1} parent=59 // pred_check_branch
          %1039 = sbr.rel (%p1037) target = $region64
        $region63: #{tpu_custom_call.1} parent=59 // pred_region
          %s1040 = smul.u32 4, %s20
          %p1041 = scmp.lt.s32.totalorder %s1040, 7
          %s1042 = scalar_select %p1041, %s1040, 7
          %s1043 = smul.addr %s1042, 4
          %s1044 = scalar_lea.vmem %s7, %s1043
        $region64: #{tpu_custom_call.1} parent=59 // pred_fallthru
          _
      $region60: #{tpu_custom_call.1} parent=5 // pred_fallthru
        _
    $region6: #{tpu_custom_call.1} parent=1 // loop_footer
      %s18 = sadd.s32 1, %s14
    $region7: #{tpu_custom_call.1} parent=1 // loop_footer_branch
      %13 = sbr.rel target = $region3
    $region8: #{tpu_custom_call.1} parent=1 // loop_exit
      _
    %1045 = vsyncpa [#allocation3], 1
    %s1046 = scalar_lea.sflag [#allocation3], 1
    %1047 = vsyncpa %s1046, 1

// kernel: tpu_custom_call.1
$region0: #{tpu_custom_call.1}
  #allocation0 [shape = 'u32[]', space=smem, size = 0x4, offset = 0x4, fixed_abs, tag = 'smem constant byte address 0x4 - core index']
  #allocation1 [shape = 'u32[144,128]{1,0:T(1,128)}', space=vmem, size = 0x12000, scoped, tag = 'internal scratch']
  %s0 = inlined_call_operand.vmem [shape: bf16[64,32], index: 0, kind: input, shape index: {}]
  %s1 = inlined_call_operand.vmem [shape: bf16[32,128], index: 1, kind: input, shape index: {}]
  %s2 = inlined_call_operand.vmem [shape: bf16[1,128], index: 2, kind: input, shape index: {}]
  %s3 = inlined_call_operand.hbm [shape: bf16[3,128,128], index: 3, kind: input, shape index: {}]
  %s4 = inlined_call_operand.vmem [shape: bf16[3,1,128], index: 4, kind: input, shape index: {}]
  %s5 = inlined_call_operand.vmem [shape: bf16[128,32], index: 5, kind: input, shape index: {}]
  %s6 = inlined_call_operand.vmem [shape: bf16[1,32], index: 6, kind: input, shape index: {}]
  %s7 = inlined_call_operand.vmem [shape: bf16[64,32], index: 7, kind: output, shape index: {}]
  %s8 = sld [smem:[#allocation0]]
  $region65: #{tpu_custom_call.1} parent=0
    _
  %s10 = ssub.s32 1, %s8
  %s11 = scalar_select 0, %s10, %s8
  $region1: #{tpu_custom_call.1} parent=0
    #allocation2 [shape = 'u8[98304]{0}', space=vmem, size = 0x18000, scoped, tag = 'input window, operand 3, single buffered']
    #allocation3 [shape = 's32[2]{0}', space=sflag, size = 0x8, scoped, tag = 'scoped memory for tpu_custom_call.1']
    %12 = vsyncpa [#allocation3], 0
    loop: start=0, step=1, limit=4
    $region2: #{tpu_custom_call.1} parent=1 // loop_pre_header
      _
    $region3: #{tpu_custom_call.1} parent=1 // loop_header
      %s14 = sphi 0, %s18
      %p15 = scmp.ge.s32.totalorder %s14, 4
      %s24 = sphi 0, %s26
      %s27 = sphi 0, %s24
      %s28 = sphi 0, %s27
      %s44 = sphi 0, %s28
      %s48 = sphi 0, %s48
      %s50 = sphi 0, %s48
      %s51 = sphi 0, %s50
      %s65 = sphi 0, %s51
      %s69 = sphi 0, %s69
      %s71 = sphi 0, %s69
      %s72 = sphi 0, %s71
      %s86 = sphi 0, %s72
      %s90 = sphi 0, %s90
      %s92 = sphi 0, %s90
      %s93 = sphi 0, %s92
      %s107 = sphi 0, %s93
      %s111 = sphi 0, %s111
      %s113 = sphi 0, %s111
      %s114 = sphi 0, %s113
      %s128 = sphi 0, %s114
      %s132 = sphi 0, %s132
      %s134 = sphi 0, %s132
      %s135 = sphi 0, %s134
      %s149 = sphi 0, %s135
      %s153 = sphi 0, %s153
      %s155 = sphi 0, %s153
      %s156 = sphi 0, %s155
      %s170 = sphi 0, %s156
      %s176 = sphi 0, %s178
      %s179 = sphi 0, %s176
      %s180 = sphi 0, %s179
      %s196 = sphi 0, %s180
    $region4: #{tpu_custom_call.1} parent=1 // loop_header_branch
      %17 = sbr.rel (%p15) target = $region8
    $region5: #{tpu_custom_call.1} parent=1 // loop_body
      %s19 = ssub.s32 %s14, 1
      %s20 = ssub.s32 %s14, 2
      %s21 = sadd.s32 %s14, 1
      %s22 = ssub.s32 %s14, %s21
      %p23 = scmp.eq.s32.totalorder %s22, 0
      %s25 = sadd.s32 %s24, 1
      %s26 = scalar_select %p23, %s24, %s25
      %p29 = pneg %p23
      %p30 = scmp.eq.s32.totalorder %s14, 1
      %p31 = por %p29, %p30
      %p32 = scmp.ne.s32.totalorder %s24, %s27
      %p33 = scmp.eq.s32.totalorder %s14, 0
      %p34 = por %p32, %p33
      %p35 = scmp.ne.s32.totalorder %s24, %s27
      %p36 = scmp.eq.s32.totalorder %s19, 1
      %p37 = por %p35, %p36
      %p38 = scmp.ne.s32.totalorder %s27, %s28
      %p39 = scmp.eq.s32.totalorder %s19, 0
      %p40 = por %p38, %p39
      %p41 = scmp.ne.s32.totalorder %s27, %s28
      %p42 = scmp.eq.s32.totalorder %s20, 1
      %p43 = por %p41, %p42
      %p45 = scmp.ne.s32.totalorder %s28, %s44
      %p46 = scmp.eq.s32.totalorder %s20, 0
      %p47 = por %p45, %p46
      %s49 = sadd.s32 %s48, 1
      %p52 = scmp.eq.s32.totalorder %s14, 1
      %p53 = scmp.ne.s32.totalorder %s48, %s50
      %p54 = scmp.eq.s32.totalorder %s14, 0
      %p55 = por %p53, %p54
      %p56 = scmp.ne.s32.totalorder %s48, %s50
      %p57 = scmp.eq.s32.totalorder %s19, 1
      %p58 = por %p56, %p57
      %p59 = scmp.ne.s32.totalorder %s50, %s51
      %p60 = scmp.eq.s32.totalorder %s19, 0
      %p61 = por %p59, %p60
      %p62 = scmp.ne.s32.totalorder %s50, %s51
      %p63 = scmp.eq.s32.totalorder %s20, 1
      %p64 = por %p62, %p63
      %p66 = scmp.ne.s32.totalorder %s51, %s65
      %p67 = scmp.eq.s32.totalorder %s20, 0
      %p68 = por %p66, %p67
      %s70 = sadd.s32 %s69, 1
      %p73 = scmp.eq.s32.totalorder %s14, 1
      %p74 = scmp.ne.s32.totalorder %s69, %s71
      %p75 = scmp.eq.s32.totalorder %s14, 0
      %p76 = por %p74, %p75
      %p77 = scmp.ne.s32.totalorder %s69, %s71
      %p78 = scmp.eq.s32.totalorder %s19, 1
      %p79 = por %p77, %p78
      %p80 = scmp.ne.s32.totalorder %s71, %s72
      %p81 = scmp.eq.s32.totalorder %s19, 0
      %p82 = por %p80, %p81
      %p83 = scmp.ne.s32.totalorder %s71, %s72
      %p84 = scmp.eq.s32.totalorder %s20, 1
      %p85 = por %p83, %p84
      %p87 = scmp.ne.s32.totalorder %s72, %s86
      %p88 = scmp.eq.s32.totalorder %s20, 0
      %p89 = por %p87, %p88
      %s91 = sadd.s32 %s90, 1
      %p94 = scmp.eq.s32.totalorder %s14, 1
      %p95 = scmp.ne.s32.totalorder %s90, %s92
      %p96 = scmp.eq.s32.totalorder %s14, 0
      %p97 = por %p95, %p96
      %p98 = scmp.ne.s32.totalorder %s90, %s92
      %p99 = scmp.eq.s32.totalorder %s19, 1
      %p100 = por %p98, %p99
      %p101 = scmp.ne.s32.totalorder %s92, %s93
      %p102 = scmp.eq.s32.totalorder %s19, 0
      %p103 = por %p101, %p102
      %p104 = scmp.ne.s32.totalorder %s92, %s93
      %p105 = scmp.eq.s32.totalorder %s20, 1
      %p106 = por %p104, %p105
      %p108 = scmp.ne.s32.totalorder %s93, %s107
      %p109 = scmp.eq.s32.totalorder %s20, 0
      %p110 = por %p108, %p109
      %s112 = sadd.s32 %s111, 1
      %p115 = scmp.eq.s32.totalorder %s14, 1
      %p116 = scmp.ne.s32.totalorder %s111, %s113
      %p117 = scmp.eq.s32.totalorder %s14, 0
      %p118 = por %p116, %p117
      %p119 = scmp.ne.s32.totalorder %s111, %s113
      %p120 = scmp.eq.s32.totalorder %s19, 1
      %p121 = por %p119, %p120
      %p122 = scmp.ne.s32.totalorder %s113, %s114
      %p123 = scmp.eq.s32.totalorder %s19, 0
      %p124 = por %p122, %p123
      %p125 = scmp.ne.s32.totalorder %s113, %s114
      %p126 = scmp.eq.s32.totalorder %s20, 1
      %p127 = por %p125, %p126
      %p129 = scmp.ne.s32.totalorder %s114, %s128
      %p130 = scmp.eq.s32.totalorder %s20, 0
      %p131 = por %p129, %p130
      %s133 = sadd.s32 %s132, 1
      %p136 = scmp.eq.s32.totalorder %s14, 1
      %p137 = scmp.ne.s32.totalorder %s132, %s134
      %p138 = scmp.eq.s32.totalorder %s14, 0
      %p139 = por %p137, %p138
      %p140 = scmp.ne.s32.totalorder %s132, %s134
      %p141 = scmp.eq.s32.totalorder %s19, 1
      %p142 = por %p140, %p141
      %p143 = scmp.ne.s32.totalorder %s134, %s135
      %p144 = scmp.eq.s32.totalorder %s19, 0
      %p145 = por %p143, %p144
      %p146 = scmp.ne.s32.totalorder %s134, %s135
      %p147 = scmp.eq.s32.totalorder %s20, 1
      %p148 = por %p146, %p147
      %p150 = scmp.ne.s32.totalorder %s135, %s149
      %p151 = scmp.eq.s32.totalorder %s20, 0
      %p152 = por %p150, %p151
      %s154 = sadd.s32 %s153, 1
      %p157 = scmp.eq.s32.totalorder %s14, 1
      %p158 = scmp.ne.s32.totalorder %s153, %s155
      %p159 = scmp.eq.s32.totalorder %s14, 0
      %p160 = por %p158, %p159
      %p161 = scmp.ne.s32.totalorder %s153, %s155
      %p162 = scmp.eq.s32.totalorder %s19, 1
      %p163 = por %p161, %p162
      %p164 = scmp.ne.s32.totalorder %s155, %s156
      %p165 = scmp.eq.s32.totalorder %s19, 0
      %p166 = por %p164, %p165
      %p167 = scmp.ne.s32.totalorder %s155, %s156
      %p168 = scmp.eq.s32.totalorder %s20, 1
      %p169 = por %p167, %p168
      %p171 = scmp.ne.s32.totalorder %s156, %s170
      %p172 = scmp.eq.s32.totalorder %s20, 0
      %p173 = por %p171, %p172
      %s174 = ssub.s32 %s14, %s21
      %p175 = scmp.eq.s32.totalorder %s174, 0
      %s177 = sadd.s32 %s176, 1
      %s178 = scalar_select %p175, %s176, %s177
      %p181 = pneg %p175
      %p182 = scmp.eq.s32.totalorder %s14, 1
      %p183 = por %p181, %p182
      %p184 = scmp.ne.s32.totalorder %s176, %s179
      %p185 = scmp.eq.s32.totalorder %s14, 0
      %p186 = por %p184, %p185
      %p187 = scmp.ne.s32.totalorder %s176, %s179
      %p188 = scmp.eq.s32.totalorder %s19, 1
      %p189 = por %p187, %p188
      %p190 = scmp.ne.s32.totalorder %s179, %s180
      %p191 = scmp.eq.s32.totalorder %s19, 0
      %p192 = por %p190, %p191
      %p193 = scmp.ne.s32.totalorder %s179, %s180
      %p194 = scmp.eq.s32.totalorder %s20, 1
      %p195 = por %p193, %p194
      %p197 = scmp.ne.s32.totalorder %s180, %s196
      %p198 = scmp.eq.s32.totalorder %s20, 0
      %p199 = por %p197, %p198
      %p200 = scmp.le.s32.totalorder 1, %s14
      %p201 = scmp.lt.s32.totalorder %s14, 3
      %p202 = pnand %p200, %p201
      %p203 = pneg %p202
      // Predicated region
      $region9: #{tpu_custom_call.1} parent=5 // pred_check
        _
      $region10: #{tpu_custom_call.1} parent=5 // pred_check_branch
        %205 = sbr.rel (%p202) target = $region12
      $region11: #{tpu_custom_call.1} parent=5 // pred_region
        %s206 = ssub.s32 %s14, 1
        // Predicated region
        $region13: #{tpu_custom_call.1} parent=11 // pred_check
          %p207 = pneg %p61
        $region14: #{tpu_custom_call.1} parent=11 // pred_check_branch
          %209 = sbr.rel (%p207) target = $region16
        $region15: #{tpu_custom_call.1} parent=11 // pred_region
          _
        $region16: #{tpu_custom_call.1} parent=11 // pred_fallthru
          _
        // Predicated region
        $region17: #{tpu_custom_call.1} parent=11 // pred_check
          %p210 = pneg %p82
        $region18: #{tpu_custom_call.1} parent=11 // pred_check_branch
          %212 = sbr.rel (%p210) target = $region20
        $region19: #{tpu_custom_call.1} parent=11 // pred_region
          _
        $region20: #{tpu_custom_call.1} parent=11 // pred_fallthru
          _
        // Predicated region
        $region21: #{tpu_custom_call.1} parent=11 // pred_check
          %p213 = pneg %p103
        $region22: #{tpu_custom_call.1} parent=11 // pred_check_branch
          %215 = sbr.rel (%p213) target = $region24
        $region23: #{tpu_custom_call.1} parent=11 // pred_region
          %s217 = ssub.s32 3072, 3072
          %218 = vsyncadd [#allocation3], %s217
          %s219 = sshll.u32 [#allocation2], 4
          %s220 = int_to_ptr.vmem [resolvable:$true] %s219
          %225 = dma.hbm_to_vmem [thread:$0]  %s3, 3072, %s220, [#allocation3], 64, 64, 4
        $region24: #{tpu_custom_call.1} parent=11 // pred_fallthru
          _
        // Predicated region
        $region25: #{tpu_custom_call.1} parent=11 // pred_check
          %p226 = pneg %p124
        $region26: #{tpu_custom_call.1} parent=11 // pred_check_branch
          %228 = sbr.rel (%p226) target = $region28
        $region27: #{tpu_custom_call.1} parent=11 // pred_region
          _
        $region28: #{tpu_custom_call.1} parent=11 // pred_fallthru
          _
        // Predicated region
        $region29: #{tpu_custom_call.1} parent=11 // pred_check
          %p229 = pneg %p145
        $region30: #{tpu_custom_call.1} parent=11 // pred_check_branch
          %231 = sbr.rel (%p229) target = $region32
        $region31: #{tpu_custom_call.1} parent=11 // pred_region
          _
        $region32: #{tpu_custom_call.1} parent=11 // pred_fallthru
          _
        // Predicated region
        $region33: #{tpu_custom_call.1} parent=11 // pred_check
          %p232 = pneg %p166
        $region34: #{tpu_custom_call.1} parent=11 // pred_check_branch
          %234 = sbr.rel (%p232) target = $region36
        $region35: #{tpu_custom_call.1} parent=11 // pred_region
          _
        $region36: #{tpu_custom_call.1} parent=11 // pred_fallthru
          _
      $region12: #{tpu_custom_call.1} parent=5 // pred_fallthru
        _
      %p235 = scmp.lt.s32.totalorder %s14, 2
      // Predicated region
      $region37: #{tpu_custom_call.1} parent=5 // pred_check
        %p236 = pneg %p235
      $region38: #{tpu_custom_call.1} parent=5 // pred_check_branch
        %238 = sbr.rel (%p236) target = $region40
      $region39: #{tpu_custom_call.1} parent=5 // pred_region
        // Predicated region
        $region41: #{tpu_custom_call.1} parent=39 // pred_check
          %p239 = pneg %p34
        $region42: #{tpu_custom_call.1} parent=39 // pred_check_branch
          %241 = sbr.rel (%p239) target = $region44
        $region43: #{tpu_custom_call.1} parent=39 // pred_region
          %s242 = smul.u32 4, %s14
          %p243 = scmp.lt.s32.totalorder %s242, 7
          %s244 = scalar_select %p243, %s242, 7
          %s245 = smul.addr %s244, 4
          %s246 = scalar_lea.vmem %s0, %s245
          %s247 = smul.u32 4, %s14
        $region44: #{tpu_custom_call.1} parent=39 // pred_fallthru
          _
      $region40: #{tpu_custom_call.1} parent=5 // pred_fallthru
        _
      %p248 = scmp.le.s32.totalorder 1, %s14
      %p249 = scmp.lt.s32.totalorder %s14, 3
      %p250 = pnand %p248, %p249
      %p251 = pneg %p250
      // Predicated region
      $region45: #{tpu_custom_call.1} parent=5 // pred_check
        _
      $region46: #{tpu_custom_call.1} parent=5 // pred_check_branch
        %253 = sbr.rel (%p250) target = $region48
      $region47: #{tpu_custom_call.1} parent=5 // pred_region
        %s254 = ssub.s32 %s14, 1
        // Predicated region
        $region49: #{tpu_custom_call.1} parent=47 // pred_check
          %p255 = pneg %p103
        $region50: #{tpu_custom_call.1} parent=47 // pred_check_branch
          %257 = sbr.rel (%p255) target = $region52
        $region51: #{tpu_custom_call.1} parent=47 // pred_region
          %258 = dma.done [#allocation3], 3072
        $region52: #{tpu_custom_call.1} parent=47 // pred_fallthru
          _
        %s259 = smul.u32 4, %s19
        %p260 = scmp.lt.s32.totalorder %s259, 7
        %s261 = scalar_select %p260, %s259, 7
        %s262 = smul.addr %s261, 4
        %s263 = scalar_lea.vmem %s0, %s262
        %p264 = pneg %p40
        %p265 = pneg %p37
        %p266 = pneg %p61
        %p267 = pneg %p58
        %p268 = pneg %p82
        %p269 = pneg %p79
        %p270 = pneg %p103
        %p271 = pneg %p100
        %p272 = pneg %p124
        %p273 = pneg %p121
        %p274 = pneg %p145
        %p275 = pneg %p142
        %p276 = pneg %p166
        %p277 = pneg %p163
        %p278 = pneg %p192
        %p279 = pneg %p189
        %s280 = smul.u32 4, %s19
        %p281 = scmp.lt.s32.totalorder %s280, 7
        %s282 = scalar_select %p281, %s280, 7
        %s283 = smul.addr %s282, 4
        %s284 = scalar_lea.vmem %s7, %s283
        %s285 = smul.u32 4, %s19
        %p286 = scmp.lt.s32.totalorder %s285, 7
        %s287 = scalar_select %p286, %s285, 7
        %s288 = smul.addr %s287, 4
        %s289 = scalar_lea.vmem %s0, %s288
        %s290 = smul.u32 4, %s19
        %s291 = smul.u32 4, %s19
        %p292 = scmp.lt.s32.totalorder %s291, 7
        %s293 = scalar_select %p292, %s291, 7
        %s294 = smul.addr %s293, 4
        %s295 = scalar_lea.vmem %s7, %s294
        %s296 = smul.u32 4, %s19
        %v302 = vld [vmem:[%s289] sm:$0xf]
        %v303 = vld [vmem:[%s289 + $0x4] sm:$0xf]
        %v304 = vld [vmem:[%s289 + $0x8] sm:$0xf]
        %v305 = vld [vmem:[%s289 + $0xc] sm:$0xf]
        %v306 = vld [vmem:[%s1] sm:$0xf]
        %v307 = vld [vmem:[%s1 + $0x4] sm:$0xf]
        %v308 = vld [vmem:[%s1 + $0x8] sm:$0xf]
        %v309 = vld [vmem:[%s1 + $0xc] sm:$0xf]
        %v314 = vunpack.c.l.b16 %v302
        %v315 = vunpack.c.l.b16 %v303
        %v316 = vunpack.c.l.b16 %v304
        %v317 = vunpack.c.l.b16 %v305
        %v318 = vpack.c.b16 %v315, %v314
        %v319 = vpack.c.b16 %v317, %v316
        %v324 = vunpack.c.l.b16 %v306
        %v325 = vunpack.c.l.b16 %v307
        %v326 = vunpack.c.l.b16 %v308
        %v327 = vunpack.c.l.b16 %v309
        %v328 = vpack.c.b16 %v325, %v324
        %v329 = vpack.c.b16 %v327, %v326
        %vm332 = vcmask 261120
        %v334 = vsel %vm332, %v318, 0
        %v337 = vsel %vm332, %v319, 0
        %339 = vmatprep.subr.bf16.mxu0 0
        %340 = vmatpush1.bf16.msra.mxu0 0
        %341 = vmatprep.subr.bf16.mxu0 0
        %342 = vmatpush1.bf16.msra.mxu0 0
        %343 = vmatprep.subr.bf16.mxu0 0
        %344 = vmatpush1.bf16.msra.mxu0 0
        %345 = vmatprep.subr.bf16.mxu0 0
        %346 = vmatpush1.bf16.msra.mxu0 0
        %347 = vmatprep.subr.bf16.mxu0 0
        %348 = vmatpush1.bf16.msra.mxu0 0
        %349 = vmatprep.subr.bf16.mxu0 0
        %350 = vmatpush1.bf16.msra.mxu0 0
        %351 = vmatprep.subr.bf16.mxu0 0
        %352 = vmatpush1.bf16.msra.mxu0 %v329
        %353 = vmatprep.subr.bf16.mxu0 0
        %354 = vmatpush1.bf16.msra.mxu0 %v328
        %355 = vmatprep.subr.bf16.mxu0 0
        %356 = vmatpush2.bf16.msra.mxu0 0
        %357 = vmatprep.subr.bf16.mxu0 0
        %358 = vmatpush2.bf16.msra.mxu0 0
        %359 = vmatprep.subr.bf16.mxu0 0
        %360 = vmatpush2.bf16.msra.mxu0 0
        %361 = vmatprep.subr.bf16.mxu0 0
        %362 = vmatpush2.bf16.msra.mxu0 0
        %363 = vmatprep.subr.bf16.mxu0 0
        %364 = vmatpush2.bf16.msra.mxu0 0
        %365 = vmatprep.subr.bf16.mxu0 0
        %366 = vmatpush2.bf16.msra.mxu0 0
        %367 = vmatprep.subr.bf16.mxu0 0
        %368 = vmatpush2.bf16.msra.mxu0 0
        %369 = vmatprep.subr.bf16.mxu0 0
        %370 = vmatpush2.bf16.msra.mxu0 0
        %371 = vmatprep.mubr.bf16.mxu0 0
        %372 = vmatmul.mubr.bf16.gmra.mxu0 %v334
        %v373 = vpop.f32.mrf.mxu0
        %v374 = vadd.f32 0.0, %v373
        %v375 = vpop.f32.mrf.mxu0
        %v376 = vpop.f32.mrf.mxu0
        %v377 = vadd.f32 0.0, %v376
        %v378 = vpop.f32.mrf.mxu0
        %379 = vmatprep.mubr.bf16.mxu0 0
        %380 = vmatmul.mubr.bf16.gmra.mxu0 %v337
        %v381 = vpop.f32.mrf.mxu0
        %v382 = vadd.f32 0.0, %v381
        %v383 = vpop.f32.mrf.mxu0
        %v384 = vpop.f32.mrf.mxu0
        %v385 = vadd.f32 0.0, %v384
        %v386 = vpop.f32.mrf.mxu0
        %387 = vdwg.mxu0
        %v388 = vpack.c.bf16 %v377, %v374
        %v389 = vpack.c.bf16 %v385, %v382
        %v390 = vld [vmem:[%s2] sm:$0x1]
        %v392 = vpack.i.b16 %v390, %v390
        %v394 = vlaneseq
        %v395 = vshrl.u32 %v394, 7
        %v396 = vsub.s32 0, %v395
        %v397 = vrot.slane %v392, %v396
        %v398 = vadd.bf16 %v388, %v397
        %v399 = vadd.bf16 %v389, %v397
        %v400 = vmul.bf16 %v398, 1056980736
        %v401 = vmul.bf16 %v399, 1056980736
        %v402 = vmul.bf16 %v398, 1027030327
        %v403 = vmul.bf16 %v399, 1027030327
        %v404 = vmul.bf16 %v402, %v398
        %v405 = vmul.bf16 %v403, %v399
        %v406 = vmul.bf16 %v404, %v398
        %v407 = vmul.bf16 %v405, %v399
        %v408 = vadd.bf16 %v398, %v406
        %v409 = vadd.bf16 %v399, %v407
        %v410 = vmul.bf16 %v408, 1061961548
        %v411 = vmul.bf16 %v409, 1061961548
        %v412 = vtanh.bf16.pop %v410
        %v413 = vtanh.bf16.pop %v411
        %v414 = vadd.bf16 %v412, 1065369472
        %v415 = vadd.bf16 %v413, 1065369472
        %v416 = vmul.bf16 %v400, %v414
        %v417 = vmul.bf16 %v401, %v415
        %v418 = vld [vmem:[#allocation2] sm:$0xf]
        %v419 = vld [vmem:[#allocation2 + $0x4] sm:$0xf]
        %v420 = vld [vmem:[#allocation2 + $0x8] sm:$0xf]
        %v421 = vld [vmem:[#allocation2 + $0xc] sm:$0xf]
        %v422 = vld [vmem:[#allocation2 + $0x10] sm:$0xf]
        %v423 = vld [vmem:[#allocation2 + $0x14] sm:$0xf]
        %v424 = vld [vmem:[#allocation2 + $0x18] sm:$0xf]
        %v425 = vld [vmem:[#allocation2 + $0x1c] sm:$0xf]
        %v426 = vld [vmem:[#allocation2 + $0x20] sm:$0xf]
        %v427 = vld [vmem:[#allocation2 + $0x24] sm:$0xf]
        %v428 = vld [vmem:[#allocation2 + $0x28] sm:$0xf]
        %v429 = vld [vmem:[#allocation2 + $0x2c] sm:$0xf]
        %v430 = vld [vmem:[#allocation2 + $0x30] sm:$0xf]
        %v431 = vld [vmem:[#allocation2 + $0x34] sm:$0xf]
        %v432 = vld [vmem:[#allocation2 + $0x38] sm:$0xf]
        %v433 = vld [vmem:[#allocation2 + $0x3c] sm:$0xf]
        %v450 = vunpack.c.l.b16 %v418
        %v451 = vunpack.c.l.b16 %v419
        %v452 = vunpack.c.l.b16 %v420
        %v453 = vunpack.c.l.b16 %v421
        %v454 = vunpack.c.l.b16 %v422
        %v455 = vunpack.c.l.b16 %v423
        %v456 = vunpack.c.l.b16 %v424
        %v457 = vunpack.c.l.b16 %v425
        %v458 = vunpack.c.l.b16 %v426
        %v459 = vunpack.c.l.b16 %v427
        %v460 = vunpack.c.l.b16 %v428
        %v461 = vunpack.c.l.b16 %v429
        %v462 = vunpack.c.l.b16 %v430
        %v463 = vunpack.c.l.b16 %v431
        %v464 = vunpack.c.l.b16 %v432
        %v465 = vunpack.c.l.b16 %v433
        %v466 = vpack.c.b16 %v451, %v450
        %v467 = vpack.c.b16 %v453, %v452
        %v468 = vpack.c.b16 %v455, %v454
        %v469 = vpack.c.b16 %v457, %v456
        %v470 = vpack.c.b16 %v459, %v458
        %v471 = vpack.c.b16 %v461, %v460
        %v472 = vpack.c.b16 %v463, %v462
        %v473 = vpack.c.b16 %v465, %v464
        %482 = vmatprep.subr.bf16.mxu0 0
        %483 = vmatpush1.bf16.msra.mxu0 %v473
        %484 = vmatprep.subr.bf16.mxu0 0
        %485 = vmatpush1.bf16.msra.mxu0 %v472
        %486 = vmatprep.subr.bf16.mxu0 0
        %487 = vmatpush1.bf16.msra.mxu0 %v471
        %488 = vmatprep.subr.bf16.mxu0 0
        %489 = vmatpush1.bf16.msra.mxu0 %v470
        %490 = vmatprep.subr.bf16.mxu0 0
        %491 = vmatpush1.bf16.msra.mxu0 %v469
        %492 = vmatprep.subr.bf16.mxu0 0
        %493 = vmatpush1.bf16.msra.mxu0 %v468
        %494 = vmatprep.subr.bf16.mxu0 0
        %495 = vmatpush1.bf16.msra.mxu0 %v467
        %496 = vmatprep.subr.bf16.mxu0 0
        %497 = vmatpush1.bf16.msra.mxu0 %v466
        %498 = vmatprep.subr.bf16.mxu0 0
        %499 = vmatpush2.bf16.msra.mxu0 0
        %500 = vmatprep.subr.bf16.mxu0 0
        %501 = vmatpush2.bf16.msra.mxu0 0
        %502 = vmatprep.subr.bf16.mxu0 0
        %503 = vmatpush2.bf16.msra.mxu0 0
        %504 = vmatprep.subr.bf16.mxu0 0
        %505 = vmatpush2.bf16.msra.mxu0 0
        %506 = vmatprep.subr.bf16.mxu0 0
        %507 = vmatpush2.bf16.msra.mxu0 0
        %508 = vmatprep.subr.bf16.mxu0 0
        %509 = vmatpush2.bf16.msra.mxu0 0
        %510 = vmatprep.subr.bf16.mxu0 0
        %511 = vmatpush2.bf16.msra.mxu0 0
        %512 = vmatprep.subr.bf16.mxu0 0
        %513 = vmatpush2.bf16.msra.mxu0 0
        %514 = vmatprep.mubr.bf16.mxu0 0
        %515 = vmatmul.mubr.bf16.gmra.mxu0 %v416
        %v516 = vpop.f32.mrf.mxu0
        %v517 = vadd.f32 0.0, %v516
        %v518 = vpop.f32.mrf.mxu0
        %v519 = vpop.f32.mrf.mxu0
        %v520 = vadd.f32 0.0, %v519
        %v521 = vpop.f32.mrf.mxu0
        %522 = vmatprep.mubr.bf16.mxu0 0
        %523 = vmatmul.mubr.bf16.gmra.mxu0 %v417
        %v524 = vpop.f32.mrf.mxu0
        %v525 = vadd.f32 0.0, %v524
        %v526 = vpop.f32.mrf.mxu0
        %v527 = vpop.f32.mrf.mxu0
        %v528 = vadd.f32 0.0, %v527
        %v529 = vpop.f32.mrf.mxu0
        %530 = vdwg.mxu0
        %v531 = vpack.c.bf16 %v520, %v517
        %v532 = vpack.c.bf16 %v528, %v525
        %v533 = vld [vmem:[%s4] sm:$0x1]
        %v535 = vpack.i.b16 %v533, %v533
        %v537 = vlaneseq
        %v538 = vshrl.u32 %v537, 7
        %v539 = vsub.s32 0, %v538
        %v540 = vrot.slane %v535, %v539
        %v541 = vadd.bf16 %v531, %v540
        %v542 = vadd.bf16 %v532, %v540
        %v543 = vmul.bf16 %v541, 1056980736
        %v544 = vmul.bf16 %v542, 1056980736
        %v545 = vmul.bf16 %v541, 1027030327
        %v546 = vmul.bf16 %v542, 1027030327
        %v547 = vmul.bf16 %v545, %v541
        %v548 = vmul.bf16 %v546, %v542
        %v549 = vmul.bf16 %v547, %v541
        %v550 = vmul.bf16 %v548, %v542
        %v551 = vadd.bf16 %v541, %v549
        %v552 = vadd.bf16 %v542, %v550
        %v553 = vmul.bf16 %v551, 1061961548
        %v554 = vmul.bf16 %v552, 1061961548
        %v555 = vtanh.bf16.pop %v553
        %v556 = vtanh.bf16.pop %v554
        %v557 = vadd.bf16 %v555, 1065369472
        %v558 = vadd.bf16 %v556, 1065369472
        %v559 = vmul.bf16 %v543, %v557
        %v560 = vmul.bf16 %v544, %v558
        %v561 = vadd.bf16 %v559, %v416
        %v562 = vadd.bf16 %v560, %v417
        %s563 = scalar_lea.vmem [#allocation2], 64
        %v564 = vld [vmem:[%s563] sm:$0xf]
        %v565 = vld [vmem:[%s563 + $0x4] sm:$0xf]
        %v566 = vld [vmem:[%s563 + $0x8] sm:$0xf]
        %v567 = vld [vmem:[%s563 + $0xc] sm:$0xf]
        %v568 = vld [vmem:[%s563 + $0x10] sm:$0xf]
        %v569 = vld [vmem:[%s563 + $0x14] sm:$0xf]
        %v570 = vld [vmem:[%s563 + $0x18] sm:$0xf]
        %v571 = vld [vmem:[%s563 + $0x1c] sm:$0xf]
        %v572 = vld [vmem:[%s563 + $0x20] sm:$0xf]
        %v573 = vld [vmem:[%s563 + $0x24] sm:$0xf]
        %v574 = vld [vmem:[%s563 + $0x28] sm:$0xf]
        %v575 = vld [vmem:[%s563 + $0x2c] sm:$0xf]
        %v576 = vld [vmem:[%s563 + $0x30] sm:$0xf]
        %v577 = vld [vmem:[%s563 + $0x34] sm:$0xf]
        %v578 = vld [vmem:[%s563 + $0x38] sm:$0xf]
        %v579 = vld [vmem:[%s563 + $0x3c] sm:$0xf]
        %v596 = vunpack.c.l.b16 %v564
        %v597 = vunpack.c.l.b16 %v565
        %v598 = vunpack.c.l.b16 %v566
        %v599 = vunpack.c.l.b16 %v567
        %v600 = vunpack.c.l.b16 %v568
        %v601 = vunpack.c.l.b16 %v569
        %v602 = vunpack.c.l.b16 %v570
        %v603 = vunpack.c.l.b16 %v571
        %v604 = vunpack.c.l.b16 %v572
        %v605 = vunpack.c.l.b16 %v573
        %v606 = vunpack.c.l.b16 %v574
        %v607 = vunpack.c.l.b16 %v575
        %v608 = vunpack.c.l.b16 %v576
        %v609 = vunpack.c.l.b16 %v577
        %v610 = vunpack.c.l.b16 %v578
        %v611 = vunpack.c.l.b16 %v579
        %v612 = vpack.c.b16 %v597, %v596
        %v613 = vpack.c.b16 %v599, %v598
        %v614 = vpack.c.b16 %v601, %v600
        %v615 = vpack.c.b16 %v603, %v602
        %v616 = vpack.c.b16 %v605, %v604
        %v617 = vpack.c.b16 %v607, %v606
        %v618 = vpack.c.b16 %v609, %v608
        %v619 = vpack.c.b16 %v611, %v610
        %628 = vmatprep.subr.bf16.mxu0 0
        %629 = vmatpush1.bf16.msra.mxu0 %v619
        %630 = vmatprep.subr.bf16.mxu0 0
        %631 = vmatpush1.bf16.msra.mxu0 %v618
        %632 = vmatprep.subr.bf16.mxu0 0
        %633 = vmatpush1.bf16.msra.mxu0 %v617
        %634 = vmatprep.subr.bf16.mxu0 0
        %635 = vmatpush1.bf16.msra.mxu0 %v616
        %636 = vmatprep.subr.bf16.mxu0 0
        %637 = vmatpush1.bf16.msra.mxu0 %v615
        %638 = vmatprep.subr.bf16.mxu0 0
        %639 = vmatpush1.bf16.msra.mxu0 %v614
        %640 = vmatprep.subr.bf16.mxu0 0
        %641 = vmatpush1.bf16.msra.mxu0 %v613
        %642 = vmatprep.subr.bf16.mxu0 0
        %643 = vmatpush1.bf16.msra.mxu0 %v612
        %644 = vmatprep.subr.bf16.mxu0 0
        %645 = vmatpush2.bf16.msra.mxu0 0
        %646 = vmatprep.subr.bf16.mxu0 0
        %647 = vmatpush2.bf16.msra.mxu0 0
        %648 = vmatprep.subr.bf16.mxu0 0
        %649 = vmatpush2.bf16.msra.mxu0 0
        %650 = vmatprep.subr.bf16.mxu0 0
        %651 = vmatpush2.bf16.msra.mxu0 0
        %652 = vmatprep.subr.bf16.mxu0 0
        %653 = vmatpush2.bf16.msra.mxu0 0
        %654 = vmatprep.subr.bf16.mxu0 0
        %655 = vmatpush2.bf16.msra.mxu0 0
        %656 = vmatprep.subr.bf16.mxu0 0
        %657 = vmatpush2.bf16.msra.mxu0 0
        %658 = vmatprep.subr.bf16.mxu0 0
        %659 = vmatpush2.bf16.msra.mxu0 0
        %660 = vmatprep.mubr.bf16.mxu0 0
        %661 = vmatmul.mubr.bf16.gmra.mxu0 %v561
        %v662 = vpop.f32.mrf.mxu0
        %v663 = vadd.f32 0.0, %v662
        %v664 = vpop.f32.mrf.mxu0
        %v665 = vpop.f32.mrf.mxu0
        %v666 = vadd.f32 0.0, %v665
        %v667 = vpop.f32.mrf.mxu0
        %668 = vmatprep.mubr.bf16.mxu0 0
        %669 = vmatmul.mubr.bf16.gmra.mxu0 %v562
        %v670 = vpop.f32.mrf.mxu0
        %v671 = vadd.f32 0.0, %v670
        %v672 = vpop.f32.mrf.mxu0
        %v673 = vpop.f32.mrf.mxu0
        %v674 = vadd.f32 0.0, %v673
        %v675 = vpop.f32.mrf.mxu0
        %676 = vdwg.mxu0
        %v677 = vpack.c.bf16 %v666, %v663
        %v678 = vpack.c.bf16 %v674, %v671
        %s679 = scalar_lea.vmem %s4, 1
        %v680 = vld [vmem:[%s679] sm:$0x1]
        %v682 = vpack.i.b16 %v680, %v680
        %v684 = vlaneseq
        %v685 = vshrl.u32 %v684, 7
        %v686 = vsub.s32 0, %v685
        %v687 = vrot.slane %v682, %v686
        %v688 = vadd.bf16 %v677, %v687
        %v689 = vadd.bf16 %v678, %v687
        %v690 = vmul.bf16 %v688, 1056980736
        %v691 = vmul.bf16 %v689, 1056980736
        %v692 = vmul.bf16 %v688, 1027030327
        %v693 = vmul.bf16 %v689, 1027030327
        %v694 = vmul.bf16 %v692, %v688
        %v695 = vmul.bf16 %v693, %v689
        %v696 = vmul.bf16 %v694, %v688
        %v697 = vmul.bf16 %v695, %v689
        %v698 = vadd.bf16 %v688, %v696
        %v699 = vadd.bf16 %v689, %v697
        %v700 = vmul.bf16 %v698, 1061961548
        %v701 = vmul.bf16 %v699, 1061961548
        %v702 = vtanh.bf16.pop %v700
        %v703 = vtanh.bf16.pop %v701
        %v704 = vadd.bf16 %v702, 1065369472
        %v705 = vadd.bf16 %v703, 1065369472
        %v706 = vmul.bf16 %v690, %v704
        %v707 = vmul.bf16 %v691, %v705
        %v708 = vadd.bf16 %v706, %v561
        %v709 = vadd.bf16 %v707, %v562
        %s710 = scalar_lea.vmem [#allocation2], 128
        %v711 = vld [vmem:[%s710] sm:$0xf]
        %v712 = vld [vmem:[%s710 + $0x4] sm:$0xf]
        %v713 = vld [vmem:[%s710 + $0x8] sm:$0xf]
        %v714 = vld [vmem:[%s710 + $0xc] sm:$0xf]
        %v715 = vld [vmem:[%s710 + $0x10] sm:$0xf]
        %v716 = vld [vmem:[%s710 + $0x14] sm:$0xf]
        %v717 = vld [vmem:[%s710 + $0x18] sm:$0xf]
        %v718 = vld [vmem:[%s710 + $0x1c] sm:$0xf]
        %v719 = vld [vmem:[%s710 + $0x20] sm:$0xf]
        %v720 = vld [vmem:[%s710 + $0x24] sm:$0xf]
        %v721 = vld [vmem:[%s710 + $0x28] sm:$0xf]
        %v722 = vld [vmem:[%s710 + $0x2c] sm:$0xf]
        %v723 = vld [vmem:[%s710 + $0x30] sm:$0xf]
        %v724 = vld [vmem:[%s710 + $0x34] sm:$0xf]
        %v725 = vld [vmem:[%s710 + $0x38] sm:$0xf]
        %v726 = vld [vmem:[%s710 + $0x3c] sm:$0xf]
        %v743 = vunpack.c.l.b16 %v711
        %v744 = vunpack.c.l.b16 %v712
        %v745 = vunpack.c.l.b16 %v713
        %v746 = vunpack.c.l.b16 %v714
        %v747 = vunpack.c.l.b16 %v715
        %v748 = vunpack.c.l.b16 %v716
        %v749 = vunpack.c.l.b16 %v717
        %v750 = vunpack.c.l.b16 %v718
        %v751 = vunpack.c.l.b16 %v719
        %v752 = vunpack.c.l.b16 %v720
        %v753 = vunpack.c.l.b16 %v721
        %v754 = vunpack.c.l.b16 %v722
        %v755 = vunpack.c.l.b16 %v723
        %v756 = vunpack.c.l.b16 %v724
        %v757 = vunpack.c.l.b16 %v725
        %v758 = vunpack.c.l.b16 %v726
        %v759 = vpack.c.b16 %v744, %v743
        %v760 = vpack.c.b16 %v746, %v745
        %v761 = vpack.c.b16 %v748, %v747
        %v762 = vpack.c.b16 %v750, %v749
        %v763 = vpack.c.b16 %v752, %v751
        %v764 = vpack.c.b16 %v754, %v753
        %v765 = vpack.c.b16 %v756, %v755
        %v766 = vpack.c.b16 %v758, %v757
        %775 = vmatprep.subr.bf16.mxu0 0
        %776 = vmatpush1.bf16.msra.mxu0 %v766
        %777 = vmatprep.subr.bf16.mxu0 0
        %778 = vmatpush1.bf16.msra.mxu0 %v765
        %779 = vmatprep.subr.bf16.mxu0 0
        %780 = vmatpush1.bf16.msra.mxu0 %v764
        %781 = vmatprep.subr.bf16.mxu0 0
        %782 = vmatpush1.bf16.msra.mxu0 %v763
        %783 = vmatprep.subr.bf16.mxu0 0
        %784 = vmatpush1.bf16.msra.mxu0 %v762
        %785 = vmatprep.subr.bf16.mxu0 0
        %786 = vmatpush1.bf16.msra.mxu0 %v761
        %787 = vmatprep.subr.bf16.mxu0 0
        %788 = vmatpush1.bf16.msra.mxu0 %v760
        %789 = vmatprep.subr.bf16.mxu0 0
        %790 = vmatpush1.bf16.msra.mxu0 %v759
        %791 = vmatprep.subr.bf16.mxu0 0
        %792 = vmatpush2.bf16.msra.mxu0 0
        %793 = vmatprep.subr.bf16.mxu0 0
        %794 = vmatpush2.bf16.msra.mxu0 0
        %795 = vmatprep.subr.bf16.mxu0 0
        %796 = vmatpush2.bf16.msra.mxu0 0
        %797 = vmatprep.subr.bf16.mxu0 0
        %798 = vmatpush2.bf16.msra.mxu0 0
        %799 = vmatprep.subr.bf16.mxu0 0
        %800 = vmatpush2.bf16.msra.mxu0 0
        %801 = vmatprep.subr.bf16.mxu0 0
        %802 = vmatpush2.bf16.msra.mxu0 0
        %803 = vmatprep.subr.bf16.mxu0 0
        %804 = vmatpush2.bf16.msra.mxu0 0
        %805 = vmatprep.subr.bf16.mxu0 0
        %806 = vmatpush2.bf16.msra.mxu0 0
        %807 = vmatprep.mubr.bf16.mxu0 0
        %808 = vmatmul.mubr.bf16.gmra.mxu0 %v708
        %v809 = vpop.f32.mrf.mxu0
        %v810 = vadd.f32 0.0, %v809
        %v811 = vpop.f32.mrf.mxu0
        %v812 = vpop.f32.mrf.mxu0
        %v813 = vadd.f32 0.0, %v812
        %v814 = vpop.f32.mrf.mxu0
        %815 = vmatprep.mubr.bf16.mxu0 0
        %816 = vmatmul.mubr.bf16.gmra.mxu0 %v709
        %v817 = vpop.f32.mrf.mxu0
        %v818 = vadd.f32 0.0, %v817
        %v819 = vpop.f32.mrf.mxu0
        %v820 = vpop.f32.mrf.mxu0
        %v821 = vadd.f32 0.0, %v820
        %v822 = vpop.f32.mrf.mxu0
        %823 = vdwg.mxu0
        %v824 = vpack.c.bf16 %v813, %v810
        %v825 = vpack.c.bf16 %v821, %v818
        %s826 = scalar_lea.vmem %s4, 2
        %v827 = vld [vmem:[%s826] sm:$0x1]
        %v829 = vpack.i.b16 %v827, %v827
        %v831 = vlaneseq
        %v832 = vshrl.u32 %v831, 7
        %v833 = vsub.s32 0, %v832
        %v834 = vrot.slane %v829, %v833
        %v835 = vadd.bf16 %v824, %v834
        %v836 = vadd.bf16 %v825, %v834
        %v837 = vmul.bf16 %v835, 1056980736
        %v838 = vmul.bf16 %v836, 1056980736
        %v839 = vmul.bf16 %v835, 1027030327
        %v840 = vmul.bf16 %v836, 1027030327
        %v841 = vmul.bf16 %v839, %v835
        %v842 = vmul.bf16 %v840, %v836
        %v843 = vmul.bf16 %v841, %v835
        %v844 = vmul.bf16 %v842, %v836
        %v845 = vadd.bf16 %v835, %v843
        %v846 = vadd.bf16 %v836, %v844
        %v847 = vmul.bf16 %v845, 1061961548
        %v848 = vmul.bf16 %v846, 1061961548
        %v849 = vtanh.bf16.pop %v847
        %v850 = vtanh.bf16.pop %v848
        %v851 = vadd.bf16 %v849, 1065369472
        %v852 = vadd.bf16 %v850, 1065369472
        %v853 = vmul.bf16 %v837, %v851
        %v854 = vmul.bf16 %v838, %v852
        %v855 = vadd.bf16 %v853, %v708
        %v856 = vadd.bf16 %v854, %v709
        %v857 = vld [vmem:[%s5] sm:$0xf]
        %v858 = vld [vmem:[%s5 + $0x4] sm:$0xf]
        %v859 = vld [vmem:[%s5 + $0x8] sm:$0xf]
        %v860 = vld [vmem:[%s5 + $0xc] sm:$0xf]
        %v861 = vld [vmem:[%s5 + $0x10] sm:$0xf]
        %v862 = vld [vmem:[%s5 + $0x14] sm:$0xf]
        %v863 = vld [vmem:[%s5 + $0x18] sm:$0xf]
        %v864 = vld [vmem:[%s5 + $0x1c] sm:$0xf]
        %v865 = vld [vmem:[%s5 + $0x20] sm:$0xf]
        %v866 = vld [vmem:[%s5 + $0x24] sm:$0xf]
        %v867 = vld [vmem:[%s5 + $0x28] sm:$0xf]
        %v868 = vld [vmem:[%s5 + $0x2c] sm:$0xf]
        %v869 = vld [vmem:[%s5 + $0x30] sm:$0xf]
        %v870 = vld [vmem:[%s5 + $0x34] sm:$0xf]
        %v871 = vld [vmem:[%s5 + $0x38] sm:$0xf]
        %v872 = vld [vmem:[%s5 + $0x3c] sm:$0xf]
        %v889 = vunpack.c.l.b16 %v857
        %v890 = vunpack.c.l.b16 %v858
        %v891 = vunpack.c.l.b16 %v859
        %v892 = vunpack.c.l.b16 %v860
        %v893 = vunpack.c.l.b16 %v861
        %v894 = vunpack.c.l.b16 %v862
        %v895 = vunpack.c.l.b16 %v863
        %v896 = vunpack.c.l.b16 %v864
        %v897 = vunpack.c.l.b16 %v865
        %v898 = vunpack.c.l.b16 %v866
        %v899 = vunpack.c.l.b16 %v867
        %v900 = vunpack.c.l.b16 %v868
        %v901 = vunpack.c.l.b16 %v869
        %v902 = vunpack.c.l.b16 %v870
        %v903 = vunpack.c.l.b16 %v871
        %v904 = vunpack.c.l.b16 %v872
        %v905 = vpack.c.b16 %v890, %v889
        %v906 = vpack.c.b16 %v892, %v891
        %v907 = vpack.c.b16 %v894, %v893
        %v908 = vpack.c.b16 %v896, %v895
        %v909 = vpack.c.b16 %v898, %v897
        %v910 = vpack.c.b16 %v900, %v899
        %v911 = vpack.c.b16 %v902, %v901
        %v912 = vpack.c.b16 %v904, %v903
        %921 = vmatprep.subr.bf16.mxu0 0
        %922 = vmatpush1.bf16.msra.mxu0 %v912
        %923 = vmatprep.subr.bf16.mxu0 0
        %924 = vmatpush1.bf16.msra.mxu0 %v911
        %925 = vmatprep.subr.bf16.mxu0 0
        %926 = vmatpush1.bf16.msra.mxu0 %v910
        %927 = vmatprep.subr.bf16.mxu0 0
        %928 = vmatpush1.bf16.msra.mxu0 %v909
        %929 = vmatprep.subr.bf16.mxu0 0
        %930 = vmatpush1.bf16.msra.mxu0 %v908
        %931 = vmatprep.subr.bf16.mxu0 0
        %932 = vmatpush1.bf16.msra.mxu0 %v907
        %933 = vmatprep.subr.bf16.mxu0 0
        %934 = vmatpush1.bf16.msra.mxu0 %v906
        %935 = vmatprep.subr.bf16.mxu0 0
        %936 = vmatpush1.bf16.msra.mxu0 %v905
        %937 = vmatprep.subr.bf16.mxu0 0
        %938 = vmatpush2.bf16.msra.mxu0 0
        %939 = vmatprep.subr.bf16.mxu0 0
        %940 = vmatpush2.bf16.msra.mxu0 0
        %941 = vmatprep.subr.bf16.mxu0 0
        %942 = vmatpush2.bf16.msra.mxu0 0
        %943 = vmatprep.subr.bf16.mxu0 0
        %944 = vmatpush2.bf16.msra.mxu0 0
        %945 = vmatprep.subr.bf16.mxu0 0
        %946 = vmatpush2.bf16.msra.mxu0 0
        %947 = vmatprep.subr.bf16.mxu0 0
        %948 = vmatpush2.bf16.msra.mxu0 0
        %949 = vmatprep.subr.bf16.mxu0 0
        %950 = vmatpush2.bf16.msra.mxu0 0
        %951 = vmatprep.subr.bf16.mxu0 0
        %952 = vmatpush2.bf16.msra.mxu0 0
        %953 = vmatprep.mubr.bf16.mxu0 0
        %954 = vmatmul.mubr.bf16.gmra.mxu0 %v855
        %v955 = vpop.f32.mrf.mxu0
        %v956 = vadd.f32 0.0, %v955
        %v957 = vpop.f32.mrf.mxu0
        %v958 = vpop.f32.mrf.mxu0
        %v959 = vadd.f32 0.0, %v958
        %v960 = vpop.f32.mrf.mxu0
        %961 = vmatprep.mubr.bf16.mxu0 0
        %962 = vmatmul.mubr.bf16.gmra.mxu0 %v856
        %v963 = vpop.f32.mrf.mxu0
        %v964 = vadd.f32 0.0, %v963
        %v965 = vpop.f32.mrf.mxu0
        %v966 = vpop.f32.mrf.mxu0
        %v967 = vadd.f32 0.0, %v966
        %v968 = vpop.f32.mrf.mxu0
        %969 = vdwg.mxu0
        %v970 = vpack.c.bf16 %v959, %v956
        %v971 = vpack.c.bf16 %v967, %v964
        %v972 = vld [vmem:[%s6] sm:$0x1]
        %v974 = vpack.i.b16 %v972, %v972
        %v976 = vlaneseq
        %v977 = vshrl.u32 %v976, 7
        %v978 = vsub.s32 0, %v977
        %v979 = vrot.slane %v974, %v978
        %v980 = vadd.bf16 %v970, %v979
        %v981 = vadd.bf16 %v971, %v979
        %v982 = vmul.bf16 %v980, 1056980736
        %v983 = vmul.bf16 %v981, 1056980736
        %v984 = vmul.bf16 %v980, 1027030327
        %v985 = vmul.bf16 %v981, 1027030327
        %v986 = vmul.bf16 %v984, %v980
        %v987 = vmul.bf16 %v985, %v981
        %v988 = vmul.bf16 %v986, %v980
        %v989 = vmul.bf16 %v987, %v981
        %v990 = vadd.bf16 %v980, %v988
        %v991 = vadd.bf16 %v981, %v989
        %v992 = vmul.bf16 %v990, 1061961548
        %v993 = vmul.bf16 %v991, 1061961548
        %v994 = vtanh.bf16.pop %v992
        %v995 = vtanh.bf16.pop %v993
        %v996 = vadd.bf16 %v994, 1065369472
        %v997 = vadd.bf16 %v995, 1065369472
        %v998 = vmul.bf16 %v982, %v996
        %v999 = vmul.bf16 %v983, %v997
        %v1002 = vadd.bf16 %v998, %v318
        %v1003 = vadd.bf16 %v999, %v319
        %v1006 = vunpack.c.l.b16 %v1002
        %v1007 = vunpack.c.h.b16 %v1002
        %v1008 = vunpack.c.l.b16 %v1003
        %v1009 = vunpack.c.h.b16 %v1003
        %v1010 = vpack.c.b16 %v1006, %v1006
        %v1011 = vpack.c.b16 %v1007, %v1007
        %v1012 = vpack.c.b16 %v1008, %v1008
        %v1013 = vpack.c.b16 %v1009, %v1009
        %vm1018 = vcmask 257024
        %1019 = vst.msk [vmem:[%s295] sm:$0xf] %vm1018, %v1010
        %1020 = vst.msk [vmem:[%s295 + $0x4] sm:$0xf] %vm1018, %v1011
        %1021 = vst.msk [vmem:[%s295 + $0x8] sm:$0xf] %vm1018, %v1012
        %1022 = vst.msk [vmem:[%s295 + $0xc] sm:$0xf] %vm1018, %v1013
        %s1023 = smul.u32 4, %s19
        %p1024 = scmp.lt.s32.totalorder %s1023, 7
        %s1025 = scalar_select %p1024, %s1023, 7
        %s1026 = smul.addr %s1025, 4
        %s1027 = scalar_lea.vmem %s7, %s1026
        // Predicated region
        $region53: #{tpu_custom_call.1} parent=47 // pred_check
          %p1028 = pneg %p189
        $region54: #{tpu_custom_call.1} parent=47 // pred_check_branch
          %1030 = sbr.rel (%p1028) target = $region56
        $region55: #{tpu_custom_call.1} parent=47 // pred_region
          %s1031 = smul.u32 4, %s19
        $region56: #{tpu_custom_call.1} parent=47 // pred_fallthru
          _
      $region48: #{tpu_custom_call.1} parent=5 // pred_fallthru
        _
      %p1032 = scmp.le.s32.totalorder 2, %s14
      // Predicated region
      $region57: #{tpu_custom_call.1} parent=5 // pred_check
        %p1033 = pneg %p1032
      $region58: #{tpu_custom_call.1} parent=5 // pred_check_branch
        %1035 = sbr.rel (%p1033) target = $region60
      $region59: #{tpu_custom_call.1} parent=5 // pred_region
        %s1036 = ssub.s32 %s14, 2
        // Predicated region
        $region61: #{tpu_custom_call.1} parent=59 // pred_check
          %p1037 = pneg %p195
        $region62: #{tpu_custom_call.1} parent=59 // pred_check_branch
          %1039 = sbr.rel (%p1037) target = $region64
        $region63: #{tpu_custom_call.1} parent=59 // pred_region
          %s1040 = smul.u32 4, %s20
          %p1041 = scmp.lt.s32.totalorder %s1040, 7
          %s1042 = scalar_select %p1041, %s1040, 7
          %s1043 = smul.addr %s1042, 4
          %s1044 = scalar_lea.vmem %s7, %s1043
        $region64: #{tpu_custom_call.1} parent=59 // pred_fallthru
          _
      $region60: #{tpu_custom_call.1} parent=5 // pred_fallthru
        _
    $region6: #{tpu_custom_call.1} parent=1 // loop_footer
      %s18 = sadd.s32 1, %s14
    $region7: #{tpu_custom_call.1} parent=1 // loop_footer_branch
      %13 = sbr.rel target = $region3
    $region8: #{tpu_custom_call.1} parent=1 // loop_exit
      _
    %1045 = vsyncpa [#allocation3], 1
    %s1046 = scalar_lea.sflag [#allocation3], 1
    %1047 = vsyncpa %s1046, 1

</llo_original>
